<compile_context>
chip_gen: v5e
topology: v5e:2x2
jax: 0.10.0
libtpu: 0.0.40
codegen_flags: <defaults>
</compile_context>

<pallas_src>
import functools
import numpy as np

import jax
import jax.numpy as jnp
from jax.experimental import pallas as pl
from jax.experimental.pallas import tpu as pltpu


# ----------------------------- in-kernel math helpers -----------------------------

def _erfc(x):
    # Numerical-Recipes rational approximation of erfc, |err| < 1.2e-7.
    z = jnp.abs(x)
    t = 1.0 / (1.0 + 0.5 * z)
    poly = (-1.26551223 + t * (1.00002368 + t * (0.37409196 + t * (0.09678418 +
            t * (-0.18628806 + t * (0.27886807 + t * (-1.13520398 + t * (1.48851587 +
            t * (-0.82215223 + t * 0.17087277)))))))))
    ans = t * jnp.exp(-z * z + poly)
    return jnp.where(x >= 0.0, ans, 2.0 - ans)


def _gelu_exact(x):
    # exact (erf-based) GELU, matching nn.GELU() default (approximate='none')
    return x * (1.0 - 0.5 * _erfc(x * 0.7071067811865476))


def _layernorm(x, g, b, eps=1e-5):
    mu = jnp.mean(x, axis=-1, keepdims=True)
    xc = x - mu
    var = jnp.mean(xc * xc, axis=-1, keepdims=True)
    return xc * jax.lax.rsqrt(var + eps) * g + b


# ----------------------------- fused ViT kernel -----------------------------

def _vit_kernel(patches_ref, waug_ref, convb_ref,
                g1_ref, b1_ref, wq_ref, bq_ref, wk_ref, bk_ref, wv_ref, bv_ref,
                wo_ref, bo_ref, g2_ref, b2_ref, w1_ref, bb1_ref, w2_ref, bb2_ref,
                ng_ref, nb_ref,
                o_ref, seq_ref, *, n_heads, head_dim):
    """grid = (batch, layer). seq_ref (VMEM scratch) carries the activation across layers."""
    l = pl.program_id(1)

    # ---- layer 0: patch embedding + cls token (one matmul via augmented patches) ----
    @pl.when(l == 0)
    def _embed():
        seq_ref[...] = (jnp.dot(patches_ref[0], waug_ref[...],
                                preferred_element_type=jnp.float32) + convb_ref[...])

    x = seq_ref[...]                                     # (S, E)
    E = x.shape[-1]

    # ---- self-attention block: x = x + MHA(LN1(x)) ----
    xn = _layernorm(x, g1_ref[0], b1_ref[0])
    # full-width projections (wq/bq already scaled by 1/sqrt(Dh) in the wrapper)
    q = jnp.dot(xn, wq_ref[0], preferred_element_type=jnp.float32) + bq_ref[0]
    k = jnp.dot(xn, wk_ref[0], preferred_element_type=jnp.float32) + bk_ref[0]
    v = jnp.dot(xn, wv_ref[0], preferred_element_type=jnp.float32) + bv_ref[0]

    # lane iota hoisted out of the head loop (broadcast_in_dim is not CSE'd by JAX)
    lane = jax.lax.broadcasted_iota(jnp.int32, (1, E), 1)
    ctx = jnp.zeros_like(x)
    for h in range(n_heads):                             # static unroll over heads
        m = ((lane >= h * head_dim) & (lane < (h + 1) * head_dim)).astype(jnp.float32)
        # masked contraction == per-head q_h @ k_h^T, without unaligned lane slicing
        s = jax.lax.dot_general(q * m, k, (((1,), (1,)), ((), ())),
                                preferred_element_type=jnp.float32)        # (S, S)
        e = jnp.exp(s - jnp.max(s, axis=-1, keepdims=True))
        p = e * pl.reciprocal(jnp.sum(e, axis=-1, keepdims=True), approx=True)
        # p_h @ (v . m) lands head h's context exactly in its lane slot; sum = concat
        ctx = ctx + jnp.dot(p, v * m, preferred_element_type=jnp.float32)  # (S, E)
    x = x + jnp.dot(ctx, wo_ref[0], preferred_element_type=jnp.float32) + bo_ref[0]

    # ---- feed-forward block: x = x + W2 @ GELU(W1 @ LN2(x)) ----
    xn2 = _layernorm(x, g2_ref[0], b2_ref[0])
    hdn = _gelu_exact(jnp.dot(xn2, w1_ref[0], preferred_element_type=jnp.float32) + bb1_ref[0])
    x = x + jnp.dot(hdn, w2_ref[0], preferred_element_type=jnp.float32) + bb2_ref[0]
    seq_ref[...] = x

    # ---- last layer: final LayerNorm, write the (layer-resident) output block ----
    @pl.when(l == pl.num_programs(1) - 1)
    def _final():
        o_ref[0] = _layernorm(seq_ref[...], ng_ref[...], nb_ref[...])


# ----------------------------- wrapper (single pallas_call) -----------------------------

def vit_forward(x, params):
    B, C, Hi, Wi = x.shape
    ph, pw = params["patch_size"]
    E = params["embed_dim"]
    Hh = params["n_heads"]
    Dh = E // Hh
    Hn, Wn = Hi // ph, Wi // pw
    N = Hn * Wn
    S = N + 1
    K = C * ph * pw
    layers = params["layers"]
    L = len(layers)
    F = layers[0]["w1"].shape[1]

    # ---- wrapper-side glue: patchify + cls-token augmentation ----
    patches = (x.reshape(B, C, Hn, ph, Wn, pw)
                .transpose(0, 2, 4, 1, 3, 5)
                .reshape(B, N, K))
    pat_rows = jnp.concatenate([jnp.zeros((B, 1, K), jnp.float32), patches], axis=1)  # (B,S,K)
    flag = jnp.concatenate([jnp.ones((B, 1, 1), jnp.float32),
                            jnp.zeros((B, N, 1), jnp.float32)], axis=1)               # (B,S,1)
    patches_aug = jnp.concatenate([pat_rows, flag], axis=2)                            # (B,S,K+1)
    # row 0: [0..0,1] @ [conv_w; cls-conv_b] + conv_b = cls ; rows 1..N: patch@conv_w + conv_b
    w_aug = jnp.concatenate([params["conv_w"],
                             params["cls_token"].reshape(1, E) - params["conv_b"]], axis=0)

    # ---- stack per-layer weights along a leading layer axis (fold attn scale into Wq) ----
    scale = 1.0 / (Dh ** 0.5)
    stk = lambda name: jnp.stack([lp[name] for lp in layers], axis=0)
    g1, b1 = stk("g1"), stk("b1")
    wq, bq = stk("wq") * scale, stk("bq") * scale
    wk, bk = stk("wk"), stk("bk")
    wv, bv = stk("wv"), stk("bv")
    wo, bo = stk("wo"), stk("bo")
    g2, b2 = stk("g2"), stk("b2")
    w1, bb1 = stk("w1"), stk("bb1")
    w2, bb2 = stk("w2"), stk("bb2")

    def lyr(*tail):   # stacked per-layer param: block over the leading layer axis
        return pl.BlockSpec((1,) + tuple(tail), lambda b, l: (l, 0, 0))

    def cst(*shape):  # constant (never re-fetched thanks to constant index_map)
        return pl.BlockSpec(tuple(shape), lambda b, l: (0, 0))

    kern = functools.partial(_vit_kernel, n_heads=Hh, head_dim=Dh)
    return pl.pallas_call(
        kern,
        out_shape=jax.ShapeDtypeStruct((B, S, E), jnp.float32),
        grid=(B, L),
        in_specs=[pl.BlockSpec((1, S, K + 1), lambda b, l: (b, 0, 0)),   # patches (per batch)
                  cst(K + 1, E), cst(1, E),                              # w_aug, conv_b
                  lyr(1, E), lyr(1, E),                                  # g1, b1
                  lyr(E, E), lyr(1, E),                                  # wq, bq
                  lyr(E, E), lyr(1, E),                                  # wk, bk
                  lyr(E, E), lyr(1, E),                                  # wv, bv
                  lyr(E, E), lyr(1, E),                                  # wo, bo
                  lyr(1, E), lyr(1, E),                                  # g2, b2
                  lyr(E, F), lyr(1, F),                                  # w1, bb1
                  lyr(F, E), lyr(1, E),                                  # w2, bb2
                  cst(1, E), cst(1, E)],                                 # norm_g, norm_b
        out_specs=pl.BlockSpec((1, S, E), lambda b, l: (b, 0, 0)),       # resident across layers
        scratch_shapes=[pltpu.VMEM((S, E), jnp.float32)],                # activation carry
        compiler_params=pltpu.CompilerParams(
            dimension_semantics=("parallel", "arbitrary")),              # batch || , layers seq.
    )(patches_aug, w_aug, params["conv_b"],
      g1, b1, wq, bq, wk, bk, wv, bv, wo, bo, g2, b2, w1, bb1, w2, bb2,
      params["norm_g"], params["norm_b"])


# ----------------------------- deterministic parameter init -----------------------------

def init_params(key, n_channels, embed_dim, n_layers, n_heads, forward_mul, image_size, patch_size):
    ph, pw = patch_size
    E = embed_dim
    F = forward_mul * E
    N = (image_size[0] * image_size[1]) // (ph * pw)

    keys = list(jax.random.split(key, 2 + 8 * n_layers))
    ki = iter(keys)

    def rnd(shape, scale=0.02):
        return scale * jax.random.normal(next(ki), shape, jnp.float32)

    conv_w = rnd((E, n_channels, ph, pw))            # torch Conv2d weight layout
    conv_b = rnd((E,))

    params = {
        "patch_size": patch_size,
        "embed_dim": E,
        "n_heads": n_heads,
        "conv_w": conv_w.reshape(E, n_channels * ph * pw).T,   # (K, E) for patches @ W
        "conv_b": conv_b.reshape(1, E),
        "cls_token": jnp.zeros((1, 1, E), jnp.float32),        # torch.zeros init
        "pos_embedding": jnp.zeros((1, N, E), jnp.float32),    # parameter exists, unused in forward()
        "norm_g": jnp.ones((1, E), jnp.float32),
        "norm_b": jnp.zeros((1, E), jnp.float32),
        "layers": [],
    }

    for _ in range(n_layers):
        in_proj_w = rnd((3 * E, E))      # torch MultiheadAttention in_proj_weight
        in_proj_b = rnd((3 * E,))
        out_w = rnd((E, E))              # out_proj.weight ; out = ctx @ out_w.T + bias
        lp = {
            "g1": jnp.ones((1, E), jnp.float32), "b1": jnp.zeros((1, E), jnp.float32),
            "wq": in_proj_w[0:E].T,                "bq": in_proj_b[0:E].reshape(1, E),
            "wk": in_proj_w[E:2 * E].T,            "bk": in_proj_b[E:2 * E].reshape(1, E),
            "wv": in_proj_w[2 * E:3 * E].T,        "bv": in_proj_b[2 * E:3 * E].reshape(1, E),
            "wo": out_w.T,                         "bo": rnd((E,)).reshape(1, E),
            "g2": jnp.ones((1, E), jnp.float32), "b2": jnp.zeros((1, E), jnp.float32),
            "w1": rnd((F, E)).T,                   "bb1": rnd((F,)).reshape(1, F),
            "w2": rnd((E, F)).T,                   "bb2": rnd((E,)).reshape(1, E),
        }
        params["layers"].append(lp)
    return params


# ----------------------------- pure-JAX reference (for validation) -----------------------------

def vit_reference(x, params, n_heads):
    hp = jax.lax.Precision.HIGHEST
    mm = lambda a, b: jnp.matmul(a, b, precision=hp)
    B, C, Hi, Wi = x.shape
    ph, pw = params["patch_size"]
    E = params["embed_dim"]
    Hn, Wn = Hi // ph, Wi // pw
    N = Hn * Wn
    S = N + 1
    Dh = E // n_heads
    K = C * ph * pw

    patches = (x.reshape(B, C, Hn, ph, Wn, pw)
                .transpose(0, 2, 4, 1, 3, 5)
                .reshape(B * N, K))
    emb = (mm(patches, params["conv_w"]) + params["conv_b"]).reshape(B, N, E)
    seq = jnp.concatenate([jnp.broadcast_to(params["cls_token"], (B, 1, E)), emb], axis=1)

    def ln(z, g, b, eps=1e-5):
        mu = z.mean(-1, keepdims=True)
        zc = z - mu
        var = (zc * zc).mean(-1, keepdims=True)
        return zc / jnp.sqrt(var + eps) * g + b

    for p in params["layers"]:
        xn = ln(seq, p["g1"], p["b1"])
        q = mm(xn, p["wq"]) + p["bq"]
        k = mm(xn, p["wk"]) + p["bk"]
        v = mm(xn, p["wv"]) + p["bv"]
        qh = q.reshape(B, S, n_heads, Dh).transpose(0, 2, 1, 3)
        kh = k.reshape(B, S, n_heads, Dh).transpose(0, 2, 1, 3)
        vh = v.reshape(B, S, n_heads, Dh).transpose(0, 2, 1, 3)
        sc = jnp.einsum('bhqd,bhkd->bhqk', qh, kh, precision=hp) / (Dh ** 0.5)
        pr = jax.nn.softmax(sc, axis=-1)
        ctx = jnp.einsum('bhqk,bhkd->bhqd', pr, vh, precision=hp)
        ctx = ctx.transpose(0, 2, 1, 3).reshape(B, S, E)
        seq = seq + mm(ctx, p["wo"]) + p["bo"]
        xn2 = ln(seq, p["g2"], p["b2"])
        hdn = jax.nn.gelu(mm(xn2, p["w1"]) + p["bb1"], approximate=False)
        seq = seq + mm(hdn, p["w2"]) + p["bb2"]
    return ln(seq, params["norm_g"], params["norm_b"])


# ----------------------------- main -----------------------------

if __name__ == "__main__":
    n_channels, embed_dim, n_layers, n_heads, forward_mul = 4, 32, 2, 4, 2
    image_size, patch_size = (16, 16), (8, 8)
    B = 2

    key = jax.random.PRNGKey(0)
    kx, kp = jax.random.split(key)
    x = jax.random.normal(kx, (B, n_channels, image_size[0], image_size[1]), jnp.float32)
    params = init_params(kp, n_channels, embed_dim, n_layers, n_heads, forward_mul,
                         image_size, patch_size)

    out = vit_forward(x, params)
    out = jax.block_until_ready(out)

    S = image_size[0] * image_size[1] // (patch_size[0] * patch_size[1]) + 1
    assert out.shape == (B, S, embed_dim), out.shape

    ref = jax.block_until_ready(vit_reference(x, params, n_heads))
    np.testing.assert_allclose(np.asarray(out), np.asarray(ref), atol=1e-2, rtol=1e-2)

    print("KERNEL_OK")
</pallas_src>

<mosaic_0001>
module attributes {stable_mosaic.version = 11 : i64} {
  func.func @_vit_kernel(%arg0: i32, %arg1: i32, %arg2: memref<1x5x257xf32, #tpu.memory_space<vmem>>, %arg3: memref<257x32xf32, #tpu.memory_space<vmem>>, %arg4: memref<1x32xf32, #tpu.memory_space<vmem>>, %arg5: memref<1x1x32xf32, #tpu.memory_space<vmem>>, %arg6: memref<1x1x32xf32, #tpu.memory_space<vmem>>, %arg7: memref<1x32x32xf32, #tpu.memory_space<vmem>>, %arg8: memref<1x1x32xf32, #tpu.memory_space<vmem>>, %arg9: memref<1x32x32xf32, #tpu.memory_space<vmem>>, %arg10: memref<1x1x32xf32, #tpu.memory_space<vmem>>, %arg11: memref<1x32x32xf32, #tpu.memory_space<vmem>>, %arg12: memref<1x1x32xf32, #tpu.memory_space<vmem>>, %arg13: memref<1x32x32xf32, #tpu.memory_space<vmem>>, %arg14: memref<1x1x32xf32, #tpu.memory_space<vmem>>, %arg15: memref<1x1x32xf32, #tpu.memory_space<vmem>>, %arg16: memref<1x1x32xf32, #tpu.memory_space<vmem>>, %arg17: memref<1x32x64xf32, #tpu.memory_space<vmem>>, %arg18: memref<1x1x64xf32, #tpu.memory_space<vmem>>, %arg19: memref<1x64x32xf32, #tpu.memory_space<vmem>>, %arg20: memref<1x1x32xf32, #tpu.memory_space<vmem>>, %arg21: memref<1x32xf32, #tpu.memory_space<vmem>>, %arg22: memref<1x32xf32, #tpu.memory_space<vmem>>, %arg23: memref<1x5x32xf32, #tpu.memory_space<vmem>>, %arg24: memref<5x32xf32, #tpu.memory_space<vmem>>) attributes {dimension_semantics = [#tpu.dimension_semantics<parallel>, #tpu.dimension_semantics<arbitrary>], iteration_bounds = array<i64: 2, 2>, scalar_prefetch = 0 : i64, scratch_operands = 1 : i64, tpu.core_type = #tpu.core_type<tc>, window_params = [{transform_indices = @transform_0, window_bounds = array<i64: 1, 5, 257>}, {pipeline_mode = #tpu.pipeline_mode<synchronous>, transform_indices = @transform_1, window_bounds = array<i64: 257, 32>}, {pipeline_mode = #tpu.pipeline_mode<synchronous>, transform_indices = @transform_2, window_bounds = array<i64: 1, 32>}, {transform_indices = @transform_3, window_bounds = array<i64: 1, 1, 32>}, {transform_indices = @transform_4, window_bounds = array<i64: 1, 1, 32>}, {transform_indices = @transform_5, window_bounds = array<i64: 1, 32, 32>}, {transform_indices = @transform_6, window_bounds = array<i64: 1, 1, 32>}, {transform_indices = @transform_7, window_bounds = array<i64: 1, 32, 32>}, {transform_indices = @transform_8, window_bounds = array<i64: 1, 1, 32>}, {transform_indices = @transform_9, window_bounds = array<i64: 1, 32, 32>}, {transform_indices = @transform_10, window_bounds = array<i64: 1, 1, 32>}, {transform_indices = @transform_11, window_bounds = array<i64: 1, 32, 32>}, {transform_indices = @transform_12, window_bounds = array<i64: 1, 1, 32>}, {transform_indices = @transform_13, window_bounds = array<i64: 1, 1, 32>}, {transform_indices = @transform_14, window_bounds = array<i64: 1, 1, 32>}, {transform_indices = @transform_15, window_bounds = array<i64: 1, 32, 64>}, {transform_indices = @transform_16, window_bounds = array<i64: 1, 1, 64>}, {transform_indices = @transform_17, window_bounds = array<i64: 1, 64, 32>}, {transform_indices = @transform_18, window_bounds = array<i64: 1, 1, 32>}, {pipeline_mode = #tpu.pipeline_mode<synchronous>, transform_indices = @transform_19, window_bounds = array<i64: 1, 32>}, {pipeline_mode = #tpu.pipeline_mode<synchronous>, transform_indices = @transform_20, window_bounds = array<i64: 1, 32>}, {transform_indices = @transform_21, window_bounds = array<i64: 1, 5, 32>}]} {
    %c0_i32 = arith.constant 0 : i32
    %0 = arith.cmpi eq, %arg1, %c0_i32 : i32
    %1 = arith.extui %0 : i1 to i32
    %c0_i32_0 = arith.constant 0 : i32
    %2 = arith.cmpi ne, %1, %c0_i32_0 : i32
    scf.if %2 {
      %c0_108 = arith.constant 0 : index
      %c0_109 = arith.constant 0 : index
      %c0_110 = arith.constant 0 : index
      %251 = vector.load %arg2[%c0_108, %c0_109, %c0_110] : memref<1x5x257xf32, #tpu.memory_space<vmem>>, vector<1x5x257xf32>
      %252 = vector.shape_cast %251 : vector<1x5x257xf32> to vector<5x257xf32>
      %c0_111 = arith.constant 0 : index
      %c0_112 = arith.constant 0 : index
      %253 = vector.load %arg3[%c0_111, %c0_112] : memref<257x32xf32, #tpu.memory_space<vmem>>, vector<257x32xf32>
      %cst_113 = arith.constant dense<0.000000e+00> : vector<5x32xf32>
      %254 = tpu.matmul %252, %253, %cst_113 {dimension_numbers = #tpu.dot_dimension_numbers<[1], [0], [0], [1], [0, 0, 1, 1], [], []>} : vector<5x257xf32>, vector<257x32xf32>, vector<5x32xf32> -> vector<5x32xf32>
      %c0_114 = arith.constant 0 : index
      %c0_115 = arith.constant 0 : index
      %255 = vector.load %arg4[%c0_114, %c0_115] : memref<1x32xf32, #tpu.memory_space<vmem>>, vector<1x32xf32>
      %256 = vector.broadcast %255 : vector<1x32xf32> to vector<5x32xf32>
      %257 = arith.addf %254, %256 : vector<5x32xf32>
      %c0_116 = arith.constant 0 : index
      %c0_117 = arith.constant 0 : index
      %258 = vector.load %arg24[%c0_116, %c0_117] : memref<5x32xf32, #tpu.memory_space<vmem>>, vector<5x32xf32>
      tpu.vector_store %arg24[%c0_116, %c0_117], %257 {strides = array<i32>} : memref<5x32xf32, #tpu.memory_space<vmem>>, vector<5x32xf32>,
    } else {
    }
    %c0 = arith.constant 0 : index
    %c0_1 = arith.constant 0 : index
    %3 = vector.load %arg24[%c0, %c0_1] : memref<5x32xf32, #tpu.memory_space<vmem>>, vector<5x32xf32>
    %c0_2 = arith.constant 0 : index
    %c0_3 = arith.constant 0 : index
    %c0_4 = arith.constant 0 : index
    %4 = vector.load %arg5[%c0_2, %c0_3, %c0_4] : memref<1x1x32xf32, #tpu.memory_space<vmem>>, vector<1x1x32xf32>
    %5 = vector.shape_cast %4 : vector<1x1x32xf32> to vector<1x32xf32>
    %c0_5 = arith.constant 0 : index
    %c0_6 = arith.constant 0 : index
    %c0_7 = arith.constant 0 : index
    %6 = vector.load %arg6[%c0_5, %c0_6, %c0_7] : memref<1x1x32xf32, #tpu.memory_space<vmem>>, vector<1x1x32xf32>
    %7 = vector.shape_cast %6 : vector<1x1x32xf32> to vector<1x32xf32>
    %cst = arith.constant dense<0.000000e+00> : vector<5xf32>
    %8 = vector.multi_reduction <add>, %3, %cst [1] : vector<5x32xf32> to vector<5xf32>
    %9 = vector.shape_cast %8 : vector<5xf32> to vector<5x1xf32>
    %cst_8 = arith.constant 3.200000e+01 : f32
    %10 = vector.broadcast %cst_8 : f32 to vector<5x1xf32>
    %11 = arith.divf %9, %10 : vector<5x1xf32>
    %12 = vector.broadcast %11 : vector<5x1xf32> to vector<5x32xf32>
    %13 = arith.subf %3, %12 : vector<5x32xf32>
    %14 = arith.mulf %13, %13 : vector<5x32xf32>
    %cst_9 = arith.constant dense<0.000000e+00> : vector<5xf32>
    %15 = vector.multi_reduction <add>, %14, %cst_9 [1] : vector<5x32xf32> to vector<5xf32>
    %16 = vector.shape_cast %15 : vector<5xf32> to vector<5x1xf32>
    %cst_10 = arith.constant 3.200000e+01 : f32
    %17 = vector.broadcast %cst_10 : f32 to vector<5x1xf32>
    %18 = arith.divf %16, %17 : vector<5x1xf32>
    %cst_11 = arith.constant 9.99999974E-6 : f32
    %19 = vector.broadcast %cst_11 : f32 to vector<5x1xf32>
    %20 = arith.addf %18, %19 : vector<5x1xf32>
    %21 = math.rsqrt %20 : vector<5x1xf32>
    %22 = vector.broadcast %21 : vector<5x1xf32> to vector<5x32xf32>
    %23 = arith.mulf %13, %22 : vector<5x32xf32>
    %24 = vector.broadcast %5 : vector<1x32xf32> to vector<5x32xf32>
    %25 = arith.mulf %23, %24 : vector<5x32xf32>
    %26 = vector.broadcast %7 : vector<1x32xf32> to vector<5x32xf32>
    %27 = arith.addf %25, %26 : vector<5x32xf32>
    %c0_12 = arith.constant 0 : index
    %c0_13 = arith.constant 0 : index
    %c0_14 = arith.constant 0 : index
    %28 = vector.load %arg7[%c0_12, %c0_13, %c0_14] : memref<1x32x32xf32, #tpu.memory_space<vmem>>, vector<1x32x32xf32>
    %29 = vector.shape_cast %28 : vector<1x32x32xf32> to vector<32x32xf32>
    %cst_15 = arith.constant dense<0.000000e+00> : vector<5x32xf32>
    %30 = tpu.matmul %27, %29, %cst_15 {dimension_numbers = #tpu.dot_dimension_numbers<[1], [0], [0], [1], [0, 0, 1, 1], [], []>} : vector<5x32xf32>, vector<32x32xf32>, vector<5x32xf32> -> vector<5x32xf32>
    %c0_16 = arith.constant 0 : index
    %c0_17 = arith.constant 0 : index
    %c0_18 = arith.constant 0 : index
    %31 = vector.load %arg8[%c0_16, %c0_17, %c0_18] : memref<1x1x32xf32, #tpu.memory_space<vmem>>, vector<1x1x32xf32>
    %32 = vector.shape_cast %31 : vector<1x1x32xf32> to vector<1x32xf32>
    %33 = vector.broadcast %32 : vector<1x32xf32> to vector<5x32xf32>
    %34 = arith.addf %30, %33 : vector<5x32xf32>
    %c0_19 = arith.constant 0 : index
    %c0_20 = arith.constant 0 : index
    %c0_21 = arith.constant 0 : index
    %35 = vector.load %arg9[%c0_19, %c0_20, %c0_21] : memref<1x32x32xf32, #tpu.memory_space<vmem>>, vector<1x32x32xf32>
    %36 = vector.shape_cast %35 : vector<1x32x32xf32> to vector<32x32xf32>
    %cst_22 = arith.constant dense<0.000000e+00> : vector<5x32xf32>
    %37 = tpu.matmul %27, %36, %cst_22 {dimension_numbers = #tpu.dot_dimension_numbers<[1], [0], [0], [1], [0, 0, 1, 1], [], []>} : vector<5x32xf32>, vector<32x32xf32>, vector<5x32xf32> -> vector<5x32xf32>
    %c0_23 = arith.constant 0 : index
    %c0_24 = arith.constant 0 : index
    %c0_25 = arith.constant 0 : index
    %38 = vector.load %arg10[%c0_23, %c0_24, %c0_25] : memref<1x1x32xf32, #tpu.memory_space<vmem>>, vector<1x1x32xf32>
    %39 = vector.shape_cast %38 : vector<1x1x32xf32> to vector<1x32xf32>
    %40 = vector.broadcast %39 : vector<1x32xf32> to vector<5x32xf32>
    %41 = arith.addf %37, %40 : vector<5x32xf32>
    %c0_26 = arith.constant 0 : index
    %c0_27 = arith.constant 0 : index
    %c0_28 = arith.constant 0 : index
    %42 = vector.load %arg11[%c0_26, %c0_27, %c0_28] : memref<1x32x32xf32, #tpu.memory_space<vmem>>, vector<1x32x32xf32>
    %43 = vector.shape_cast %42 : vector<1x32x32xf32> to vector<32x32xf32>
    %cst_29 = arith.constant dense<0.000000e+00> : vector<5x32xf32>
    %44 = tpu.matmul %27, %43, %cst_29 {dimension_numbers = #tpu.dot_dimension_numbers<[1], [0], [0], [1], [0, 0, 1, 1], [], []>} : vector<5x32xf32>, vector<32x32xf32>, vector<5x32xf32> -> vector<5x32xf32>
    %c0_30 = arith.constant 0 : index
    %c0_31 = arith.constant 0 : index
    %c0_32 = arith.constant 0 : index
    %45 = vector.load %arg12[%c0_30, %c0_31, %c0_32] : memref<1x1x32xf32, #tpu.memory_space<vmem>>, vector<1x1x32xf32>
    %46 = vector.shape_cast %45 : vector<1x1x32xf32> to vector<1x32xf32>
    %47 = vector.broadcast %46 : vector<1x32xf32> to vector<5x32xf32>
    %48 = arith.addf %44, %47 : vector<5x32xf32>
    %49 = tpu.iota {dimensions = array<i32: 1>} : vector<1x32xi32>
    %cst_33 = arith.constant 0.000000e+00 : f32
    %50 = vector.broadcast %cst_33 : f32 to vector<5x32xf32>
    %c0_i32_34 = arith.constant 0 : i32
    %51 = vector.broadcast %c0_i32_34 : i32 to vector<1x32xi32>
    %52 = arith.cmpi sge, %49, %51 : vector<1x32xi32>
    %c8_i32 = arith.constant 8 : i32
    %53 = vector.broadcast %c8_i32 : i32 to vector<1x32xi32>
    %54 = arith.cmpi slt, %49, %53 : vector<1x32xi32>
    %55 = arith.andi %52, %54 : vector<1x32xi1>
    %56 = arith.extui %55 : vector<1x32xi1> to vector<1x32xi32>
    %57 = arith.sitofp %56 : vector<1x32xi32> to vector<1x32xf32>
    %58 = vector.broadcast %57 : vector<1x32xf32> to vector<5x32xf32>
    %59 = arith.mulf %34, %58 : vector<5x32xf32>
    %cst_35 = arith.constant dense<0.000000e+00> : vector<5x5xf32>
    %60 = tpu.matmul %59, %41, %cst_35 {dimension_numbers = #tpu.dot_dimension_numbers<[1], [1], [0], [0], [0, 0, 1, 0], [], []>} : vector<5x32xf32>, vector<5x32xf32>, vector<5x5xf32> -> vector<5x5xf32>
    %cst_36 = arith.constant dense<0xFF800000> : vector<5xf32>
    %61 = vector.multi_reduction <maximumf>, %60, %cst_36 [1] : vector<5x5xf32> to vector<5xf32>
    %62 = vector.shape_cast %61 : vector<5xf32> to vector<5x1xf32>
    %63 = vector.broadcast %62 : vector<5x1xf32> to vector<5x5xf32>
    %64 = arith.subf %60, %63 : vector<5x5xf32>
    %65 = math.exp %64 : vector<5x5xf32>
    %cst_37 = arith.constant dense<0.000000e+00> : vector<5xf32>
    %66 = vector.multi_reduction <add>, %65, %cst_37 [1] : vector<5x5xf32> to vector<5xf32>
    %67 = vector.shape_cast %66 : vector<5xf32> to vector<5x1xf32>
    %68 = tpu.reciprocal %67 {approx = true} : vector<5x1xf32> -> vector<5x1xf32>
    %69 = vector.broadcast %68 : vector<5x1xf32> to vector<5x5xf32>
    %70 = arith.mulf %65, %69 : vector<5x5xf32>
    %71 = vector.broadcast %57 : vector<1x32xf32> to vector<5x32xf32>
    %72 = arith.mulf %48, %71 : vector<5x32xf32>
    %cst_38 = arith.constant dense<0.000000e+00> : vector<5x32xf32>
    %73 = tpu.matmul %70, %72, %cst_38 {dimension_numbers = #tpu.dot_dimension_numbers<[1], [0], [0], [1], [0, 0, 1, 1], [], []>} : vector<5x5xf32>, vector<5x32xf32>, vector<5x32xf32> -> vector<5x32xf32>
    %74 = arith.addf %50, %73 : vector<5x32xf32>
    %c8_i32_39 = arith.constant 8 : i32
    %75 = vector.broadcast %c8_i32_39 : i32 to vector<1x32xi32>
    %76 = arith.cmpi sge, %49, %75 : vector<1x32xi32>
    %c16_i32 = arith.constant 16 : i32
    %77 = vector.broadcast %c16_i32 : i32 to vector<1x32xi32>
    %78 = arith.cmpi slt, %49, %77 : vector<1x32xi32>
    %79 = arith.andi %76, %78 : vector<1x32xi1>
    %80 = arith.extui %79 : vector<1x32xi1> to vector<1x32xi32>
    %81 = arith.sitofp %80 : vector<1x32xi32> to vector<1x32xf32>
    %82 = vector.broadcast %81 : vector<1x32xf32> to vector<5x32xf32>
    %83 = arith.mulf %34, %82 : vector<5x32xf32>
    %cst_40 = arith.constant dense<0.000000e+00> : vector<5x5xf32>
    %84 = tpu.matmul %83, %41, %cst_40 {dimension_numbers = #tpu.dot_dimension_numbers<[1], [1], [0], [0], [0, 0, 1, 0], [], []>} : vector<5x32xf32>, vector<5x32xf32>, vector<5x5xf32> -> vector<5x5xf32>
    %cst_41 = arith.constant dense<0xFF800000> : vector<5xf32>
    %85 = vector.multi_reduction <maximumf>, %84, %cst_41 [1] : vector<5x5xf32> to vector<5xf32>
    %86 = vector.shape_cast %85 : vector<5xf32> to vector<5x1xf32>
    %87 = vector.broadcast %86 : vector<5x1xf32> to vector<5x5xf32>
    %88 = arith.subf %84, %87 : vector<5x5xf32>
    %89 = math.exp %88 : vector<5x5xf32>
    %cst_42 = arith.constant dense<0.000000e+00> : vector<5xf32>
    %90 = vector.multi_reduction <add>, %89, %cst_42 [1] : vector<5x5xf32> to vector<5xf32>
    %91 = vector.shape_cast %90 : vector<5xf32> to vector<5x1xf32>
    %92 = tpu.reciprocal %91 {approx = true} : vector<5x1xf32> -> vector<5x1xf32>
    %93 = vector.broadcast %92 : vector<5x1xf32> to vector<5x5xf32>
    %94 = arith.mulf %89, %93 : vector<5x5xf32>
    %95 = vector.broadcast %81 : vector<1x32xf32> to vector<5x32xf32>
    %96 = arith.mulf %48, %95 : vector<5x32xf32>
    %cst_43 = arith.constant dense<0.000000e+00> : vector<5x32xf32>
    %97 = tpu.matmul %94, %96, %cst_43 {dimension_numbers = #tpu.dot_dimension_numbers<[1], [0], [0], [1], [0, 0, 1, 1], [], []>} : vector<5x5xf32>, vector<5x32xf32>, vector<5x32xf32> -> vector<5x32xf32>
    %98 = arith.addf %74, %97 : vector<5x32xf32>
    %c16_i32_44 = arith.constant 16 : i32
    %99 = vector.broadcast %c16_i32_44 : i32 to vector<1x32xi32>
    %100 = arith.cmpi sge, %49, %99 : vector<1x32xi32>
    %c24_i32 = arith.constant 24 : i32
    %101 = vector.broadcast %c24_i32 : i32 to vector<1x32xi32>
    %102 = arith.cmpi slt, %49, %101 : vector<1x32xi32>
    %103 = arith.andi %100, %102 : vector<1x32xi1>
    %104 = arith.extui %103 : vector<1x32xi1> to vector<1x32xi32>
    %105 = arith.sitofp %104 : vector<1x32xi32> to vector<1x32xf32>
    %106 = vector.broadcast %105 : vector<1x32xf32> to vector<5x32xf32>
    %107 = arith.mulf %34, %106 : vector<5x32xf32>
    %cst_45 = arith.constant dense<0.000000e+00> : vector<5x5xf32>
    %108 = tpu.matmul %107, %41, %cst_45 {dimension_numbers = #tpu.dot_dimension_numbers<[1], [1], [0], [0], [0, 0, 1, 0], [], []>} : vector<5x32xf32>, vector<5x32xf32>, vector<5x5xf32> -> vector<5x5xf32>
    %cst_46 = arith.constant dense<0xFF800000> : vector<5xf32>
    %109 = vector.multi_reduction <maximumf>, %108, %cst_46 [1] : vector<5x5xf32> to vector<5xf32>
    %110 = vector.shape_cast %109 : vector<5xf32> to vector<5x1xf32>
    %111 = vector.broadcast %110 : vector<5x1xf32> to vector<5x5xf32>
    %112 = arith.subf %108, %111 : vector<5x5xf32>
    %113 = math.exp %112 : vector<5x5xf32>
    %cst_47 = arith.constant dense<0.000000e+00> : vector<5xf32>
    %114 = vector.multi_reduction <add>, %113, %cst_47 [1] : vector<5x5xf32> to vector<5xf32>
    %115 = vector.shape_cast %114 : vector<5xf32> to vector<5x1xf32>
    %116 = tpu.reciprocal %115 {approx = true} : vector<5x1xf32> -> vector<5x1xf32>
    %117 = vector.broadcast %116 : vector<5x1xf32> to vector<5x5xf32>
    %118 = arith.mulf %113, %117 : vector<5x5xf32>
    %119 = vector.broadcast %105 : vector<1x32xf32> to vector<5x32xf32>
    %120 = arith.mulf %48, %119 : vector<5x32xf32>
    %cst_48 = arith.constant dense<0.000000e+00> : vector<5x32xf32>
    %121 = tpu.matmul %118, %120, %cst_48 {dimension_numbers = #tpu.dot_dimension_numbers<[1], [0], [0], [1], [0, 0, 1, 1], [], []>} : vector<5x5xf32>, vector<5x32xf32>, vector<5x32xf32> -> vector<5x32xf32>
    %122 = arith.addf %98, %121 : vector<5x32xf32>
    %c24_i32_49 = arith.constant 24 : i32
    %123 = vector.broadcast %c24_i32_49 : i32 to vector<1x32xi32>
    %124 = arith.cmpi sge, %49, %123 : vector<1x32xi32>
    %c32_i32 = arith.constant 32 : i32
    %125 = vector.broadcast %c32_i32 : i32 to vector<1x32xi32>
    %126 = arith.cmpi slt, %49, %125 : vector<1x32xi32>
    %127 = arith.andi %124, %126 : vector<1x32xi1>
    %128 = arith.extui %127 : vector<1x32xi1> to vector<1x32xi32>
    %129 = arith.sitofp %128 : vector<1x32xi32> to vector<1x32xf32>
    %130 = vector.broadcast %129 : vector<1x32xf32> to vector<5x32xf32>
    %131 = arith.mulf %34, %130 : vector<5x32xf32>
    %cst_50 = arith.constant dense<0.000000e+00> : vector<5x5xf32>
    %132 = tpu.matmul %131, %41, %cst_50 {dimension_numbers = #tpu.dot_dimension_numbers<[1], [1], [0], [0], [0, 0, 1, 0], [], []>} : vector<5x32xf32>, vector<5x32xf32>, vector<5x5xf32> -> vector<5x5xf32>
    %cst_51 = arith.constant dense<0xFF800000> : vector<5xf32>
    %133 = vector.multi_reduction <maximumf>, %132, %cst_51 [1] : vector<5x5xf32> to vector<5xf32>
    %134 = vector.shape_cast %133 : vector<5xf32> to vector<5x1xf32>
    %135 = vector.broadcast %134 : vector<5x1xf32> to vector<5x5xf32>
    %136 = arith.subf %132, %135 : vector<5x5xf32>
    %137 = math.exp %136 : vector<5x5xf32>
    %cst_52 = arith.constant dense<0.000000e+00> : vector<5xf32>
    %138 = vector.multi_reduction <add>, %137, %cst_52 [1] : vector<5x5xf32> to vector<5xf32>
    %139 = vector.shape_cast %138 : vector<5xf32> to vector<5x1xf32>
    %140 = tpu.reciprocal %139 {approx = true} : vector<5x1xf32> -> vector<5x1xf32>
    %141 = vector.broadcast %140 : vector<5x1xf32> to vector<5x5xf32>
    %142 = arith.mulf %137, %141 : vector<5x5xf32>
    %143 = vector.broadcast %129 : vector<1x32xf32> to vector<5x32xf32>
    %144 = arith.mulf %48, %143 : vector<5x32xf32>
    %cst_53 = arith.constant dense<0.000000e+00> : vector<5x32xf32>
    %145 = tpu.matmul %142, %144, %cst_53 {dimension_numbers = #tpu.dot_dimension_numbers<[1], [0], [0], [1], [0, 0, 1, 1], [], []>} : vector<5x5xf32>, vector<5x32xf32>, vector<5x32xf32> -> vector<5x32xf32>
    %146 = arith.addf %122, %145 : vector<5x32xf32>
    %c0_54 = arith.constant 0 : index
    %c0_55 = arith.constant 0 : index
    %c0_56 = arith.constant 0 : index
    %147 = vector.load %arg13[%c0_54, %c0_55, %c0_56] : memref<1x32x32xf32, #tpu.memory_space<vmem>>, vector<1x32x32xf32>
    %148 = vector.shape_cast %147 : vector<1x32x32xf32> to vector<32x32xf32>
    %cst_57 = arith.constant dense<0.000000e+00> : vector<5x32xf32>
    %149 = tpu.matmul %146, %148, %cst_57 {dimension_numbers = #tpu.dot_dimension_numbers<[1], [0], [0], [1], [0, 0, 1, 1], [], []>} : vector<5x32xf32>, vector<32x32xf32>, vector<5x32xf32> -> vector<5x32xf32>
    %150 = arith.addf %3, %149 : vector<5x32xf32>
    %c0_58 = arith.constant 0 : index
    %c0_59 = arith.constant 0 : index
    %c0_60 = arith.constant 0 : index
    %151 = vector.load %arg14[%c0_58, %c0_59, %c0_60] : memref<1x1x32xf32, #tpu.memory_space<vmem>>, vector<1x1x32xf32>
    %152 = vector.shape_cast %151 : vector<1x1x32xf32> to vector<1x32xf32>
    %153 = vector.broadcast %152 : vector<1x32xf32> to vector<5x32xf32>
    %154 = arith.addf %150, %153 : vector<5x32xf32>
    %c0_61 = arith.constant 0 : index
    %c0_62 = arith.constant 0 : index
    %c0_63 = arith.constant 0 : index
    %155 = vector.load %arg15[%c0_61, %c0_62, %c0_63] : memref<1x1x32xf32, #tpu.memory_space<vmem>>, vector<1x1x32xf32>
    %156 = vector.shape_cast %155 : vector<1x1x32xf32> to vector<1x32xf32>
    %c0_64 = arith.constant 0 : index
    %c0_65 = arith.constant 0 : index
    %c0_66 = arith.constant 0 : index
    %157 = vector.load %arg16[%c0_64, %c0_65, %c0_66] : memref<1x1x32xf32, #tpu.memory_space<vmem>>, vector<1x1x32xf32>
    %158 = vector.shape_cast %157 : vector<1x1x32xf32> to vector<1x32xf32>
    %cst_67 = arith.constant dense<0.000000e+00> : vector<5xf32>
    %159 = vector.multi_reduction <add>, %154, %cst_67 [1] : vector<5x32xf32> to vector<5xf32>
    %160 = vector.shape_cast %159 : vector<5xf32> to vector<5x1xf32>
    %cst_68 = arith.constant 3.200000e+01 : f32
    %161 = vector.broadcast %cst_68 : f32 to vector<5x1xf32>
    %162 = arith.divf %160, %161 : vector<5x1xf32>
    %163 = vector.broadcast %162 : vector<5x1xf32> to vector<5x32xf32>
    %164 = arith.subf %154, %163 : vector<5x32xf32>
    %165 = arith.mulf %164, %164 : vector<5x32xf32>
    %cst_69 = arith.constant dense<0.000000e+00> : vector<5xf32>
    %166 = vector.multi_reduction <add>, %165, %cst_69 [1] : vector<5x32xf32> to vector<5xf32>
    %167 = vector.shape_cast %166 : vector<5xf32> to vector<5x1xf32>
    %cst_70 = arith.constant 3.200000e+01 : f32
    %168 = vector.broadcast %cst_70 : f32 to vector<5x1xf32>
    %169 = arith.divf %167, %168 : vector<5x1xf32>
    %cst_71 = arith.constant 9.99999974E-6 : f32
    %170 = vector.broadcast %cst_71 : f32 to vector<5x1xf32>
    %171 = arith.addf %169, %170 : vector<5x1xf32>
    %172 = math.rsqrt %171 : vector<5x1xf32>
    %173 = vector.broadcast %172 : vector<5x1xf32> to vector<5x32xf32>
    %174 = arith.mulf %164, %173 : vector<5x32xf32>
    %175 = vector.broadcast %156 : vector<1x32xf32> to vector<5x32xf32>
    %176 = arith.mulf %174, %175 : vector<5x32xf32>
    %177 = vector.broadcast %158 : vector<1x32xf32> to vector<5x32xf32>
    %178 = arith.addf %176, %177 : vector<5x32xf32>
    %c0_72 = arith.constant 0 : index
    %c0_73 = arith.constant 0 : index
    %c0_74 = arith.constant 0 : index
    %179 = vector.load %arg17[%c0_72, %c0_73, %c0_74] : memref<1x32x64xf32, #tpu.memory_space<vmem>>, vector<1x32x64xf32>
    %180 = vector.shape_cast %179 : vector<1x32x64xf32> to vector<32x64xf32>
    %cst_75 = arith.constant dense<0.000000e+00> : vector<5x64xf32>
    %181 = tpu.matmul %178, %180, %cst_75 {dimension_numbers = #tpu.dot_dimension_numbers<[1], [0], [0], [1], [0, 0, 1, 1], [], []>} : vector<5x32xf32>, vector<32x64xf32>, vector<5x64xf32> -> vector<5x64xf32>
    %c0_76 = arith.constant 0 : index
    %c0_77 = arith.constant 0 : index
    %c0_78 = arith.constant 0 : index
    %182 = vector.load %arg18[%c0_76, %c0_77, %c0_78] : memref<1x1x64xf32, #tpu.memory_space<vmem>>, vector<1x1x64xf32>
    %183 = vector.shape_cast %182 : vector<1x1x64xf32> to vector<1x64xf32>
    %184 = vector.broadcast %183 : vector<1x64xf32> to vector<5x64xf32>
    %185 = arith.addf %181, %184 : vector<5x64xf32>
    %cst_79 = arith.constant 0.707106769 : f32
    %186 = vector.broadcast %cst_79 : f32 to vector<5x64xf32>
    %187 = arith.mulf %185, %186 : vector<5x64xf32>
    %188 = math.absf %187 : vector<5x64xf32>
    %cst_80 = arith.constant 5.000000e-01 : f32
    %189 = vector.broadcast %cst_80 : f32 to vector<5x64xf32>
    %190 = arith.mulf %189, %188 : vector<5x64xf32>
    %cst_81 = arith.constant 1.000000e+00 : f32
    %191 = vector.broadcast %cst_81 : f32 to vector<5x64xf32>
    %192 = arith.addf %191, %190 : vector<5x64xf32>
    %cst_82 = arith.constant 1.000000e+00 : f32
    %193 = vector.broadcast %cst_82 : f32 to vector<5x64xf32>
    %194 = arith.divf %193, %192 : vector<5x64xf32>
    %cst_83 = arith.constant 0.170872763 : f32
    %195 = vector.broadcast %cst_83 : f32 to vector<5x64xf32>
    %196 = arith.mulf %194, %195 : vector<5x64xf32>
    %cst_84 = arith.constant -0.822152256 : f32
    %197 = vector.broadcast %cst_84 : f32 to vector<5x64xf32>
    %198 = arith.addf %197, %196 : vector<5x64xf32>
    %199 = arith.mulf %194, %198 : vector<5x64xf32>
    %cst_85 = arith.constant 1.48851585 : f32
    %200 = vector.broadcast %cst_85 : f32 to vector<5x64xf32>
    %201 = arith.addf %200, %199 : vector<5x64xf32>
    %202 = arith.mulf %194, %201 : vector<5x64xf32>
    %cst_86 = arith.constant -1.13520396 : f32
    %203 = vector.broadcast %cst_86 : f32 to vector<5x64xf32>
    %204 = arith.addf %203, %202 : vector<5x64xf32>
    %205 = arith.mulf %194, %204 : vector<5x64xf32>
    %cst_87 = arith.constant 0.278868079 : f32
    %206 = vector.broadcast %cst_87 : f32 to vector<5x64xf32>
    %207 = arith.addf %206, %205 : vector<5x64xf32>
    %208 = arith.mulf %194, %207 : vector<5x64xf32>
    %cst_88 = arith.constant -0.186288059 : f32
    %209 = vector.broadcast %cst_88 : f32 to vector<5x64xf32>
    %210 = arith.addf %209, %208 : vector<5x64xf32>
    %211 = arith.mulf %194, %210 : vector<5x64xf32>
    %cst_89 = arith.constant 0.0967841818 : f32
    %212 = vector.broadcast %cst_89 : f32 to vector<5x64xf32>
    %213 = arith.addf %212, %211 : vector<5x64xf32>
    %214 = arith.mulf %194, %213 : vector<5x64xf32>
    %cst_90 = arith.constant 0.374091953 : f32
    %215 = vector.broadcast %cst_90 : f32 to vector<5x64xf32>
    %216 = arith.addf %215, %214 : vector<5x64xf32>
    %217 = arith.mulf %194, %216 : vector<5x64xf32>
    %cst_91 = arith.constant 1.00002372 : f32
    %218 = vector.broadcast %cst_91 : f32 to vector<5x64xf32>
    %219 = arith.addf %218, %217 : vector<5x64xf32>
    %220 = arith.mulf %194, %219 : vector<5x64xf32>
    %cst_92 = arith.constant -1.26551223 : f32
    %221 = vector.broadcast %cst_92 : f32 to vector<5x64xf32>
    %222 = arith.addf %221, %220 : vector<5x64xf32>
    %cst_93 = arith.constant 0.000000e+00 : f32
    %223 = vector.broadcast %cst_93 : f32 to vector<5x64xf32>
    %224 = arith.subf %223, %188 : vector<5x64xf32>
    %225 = arith.mulf %224, %188 : vector<5x64xf32>
    %226 = arith.addf %225, %222 : vector<5x64xf32>
    %227 = math.exp %226 : vector<5x64xf32>
    %228 = arith.mulf %194, %227 : vector<5x64xf32>
    %cst_94 = arith.constant 0.000000e+00 : f32
    %229 = vector.broadcast %cst_94 : f32 to vector<5x64xf32>
    %230 = arith.cmpf oge, %187, %229 : vector<5x64xf32>
    %cst_95 = arith.constant 2.000000e+00 : f32
    %231 = vector.broadcast %cst_95 : f32 to vector<5x64xf32>
    %232 = arith.subf %231, %228 : vector<5x64xf32>
    %233 = arith.select %230, %228, %232 : vector<5x64xi1>, vector<5x64xf32>
    %cst_96 = arith.constant 5.000000e-01 : f32
    %234 = vector.broadcast %cst_96 : f32 to vector<5x64xf32>
    %235 = arith.mulf %234, %233 : vector<5x64xf32>
    %cst_97 = arith.constant 1.000000e+00 : f32
    %236 = vector.broadcast %cst_97 : f32 to vector<5x64xf32>
    %237 = arith.subf %236, %235 : vector<5x64xf32>
    %238 = arith.mulf %185, %237 : vector<5x64xf32>
    %c0_98 = arith.constant 0 : index
    %c0_99 = arith.constant 0 : index
    %c0_100 = arith.constant 0 : index
    %239 = vector.load %arg19[%c0_98, %c0_99, %c0_100] : memref<1x64x32xf32, #tpu.memory_space<vmem>>, vector<1x64x32xf32>
    %240 = vector.shape_cast %239 : vector<1x64x32xf32> to vector<64x32xf32>
    %cst_101 = arith.constant dense<0.000000e+00> : vector<5x32xf32>
    %241 = tpu.matmul %238, %240, %cst_101 {dimension_numbers = #tpu.dot_dimension_numbers<[1], [0], [0], [1], [0, 0, 1, 1], [], []>} : vector<5x64xf32>, vector<64x32xf32>, vector<5x32xf32> -> vector<5x32xf32>
    %242 = arith.addf %154, %241 : vector<5x32xf32>
    %c0_102 = arith.constant 0 : index
    %c0_103 = arith.constant 0 : index
    %c0_104 = arith.constant 0 : index
    %243 = vector.load %arg20[%c0_102, %c0_103, %c0_104] : memref<1x1x32xf32, #tpu.memory_space<vmem>>, vector<1x1x32xf32>
    %244 = vector.shape_cast %243 : vector<1x1x32xf32> to vector<1x32xf32>
    %245 = vector.broadcast %244 : vector<1x32xf32> to vector<5x32xf32>
    %246 = arith.addf %242, %245 : vector<5x32xf32>
    %c0_105 = arith.constant 0 : index
    %c0_106 = arith.constant 0 : index
    %247 = vector.load %arg24[%c0_105, %c0_106] : memref<5x32xf32, #tpu.memory_space<vmem>>, vector<5x32xf32>
    tpu.vector_store %arg24[%c0_105, %c0_106], %246 {strides = array<i32>} : memref<5x32xf32, #tpu.memory_space<vmem>>, vector<5x32xf32>,
    %c1_i32 = arith.constant 1 : i32
    %248 = arith.cmpi eq, %arg1, %c1_i32 : i32
    %249 = arith.extui %248 : i1 to i32
    %c0_i32_107 = arith.constant 0 : i32
    %250 = arith.cmpi ne, %249, %c0_i32_107 : i32
    scf.if %250 {
      %c0_108 = arith.constant 0 : index
      %c0_109 = arith.constant 0 : index
      %251 = vector.load %arg24[%c0_108, %c0_109] : memref<5x32xf32, #tpu.memory_space<vmem>>, vector<5x32xf32>
      %c0_110 = arith.constant 0 : index
      %c0_111 = arith.constant 0 : index
      %252 = vector.load %arg21[%c0_110, %c0_111] : memref<1x32xf32, #tpu.memory_space<vmem>>, vector<1x32xf32>
      %c0_112 = arith.constant 0 : index
      %c0_113 = arith.constant 0 : index
      %253 = vector.load %arg22[%c0_112, %c0_113] : memref<1x32xf32, #tpu.memory_space<vmem>>, vector<1x32xf32>
      %cst_114 = arith.constant dense<0.000000e+00> : vector<5xf32>
      %254 = vector.multi_reduction <add>, %251, %cst_114 [1] : vector<5x32xf32> to vector<5xf32>
      %255 = vector.shape_cast %254 : vector<5xf32> to vector<5x1xf32>
      %cst_115 = arith.constant 3.200000e+01 : f32
      %256 = vector.broadcast %cst_115 : f32 to vector<5x1xf32>
      %257 = arith.divf %255, %256 : vector<5x1xf32>
      %258 = vector.broadcast %257 : vector<5x1xf32> to vector<5x32xf32>
      %259 = arith.subf %251, %258 : vector<5x32xf32>
      %260 = arith.mulf %259, %259 : vector<5x32xf32>
      %cst_116 = arith.constant dense<0.000000e+00> : vector<5xf32>
      %261 = vector.multi_reduction <add>, %260, %cst_116 [1] : vector<5x32xf32> to vector<5xf32>
      %262 = vector.shape_cast %261 : vector<5xf32> to vector<5x1xf32>
      %cst_117 = arith.constant 3.200000e+01 : f32
      %263 = vector.broadcast %cst_117 : f32 to vector<5x1xf32>
      %264 = arith.divf %262, %263 : vector<5x1xf32>
      %cst_118 = arith.constant 9.99999974E-6 : f32
      %265 = vector.broadcast %cst_118 : f32 to vector<5x1xf32>
      %266 = arith.addf %264, %265 : vector<5x1xf32>
      %267 = math.rsqrt %266 : vector<5x1xf32>
      %268 = vector.broadcast %267 : vector<5x1xf32> to vector<5x32xf32>
      %269 = arith.mulf %259, %268 : vector<5x32xf32>
      %270 = vector.broadcast %252 : vector<1x32xf32> to vector<5x32xf32>
      %271 = arith.mulf %269, %270 : vector<5x32xf32>
      %272 = vector.broadcast %253 : vector<1x32xf32> to vector<5x32xf32>
      %273 = arith.addf %271, %272 : vector<5x32xf32>
      %c0_119 = arith.constant 0 : index
      %c0_120 = arith.constant 0 : index
      %c0_121 = arith.constant 0 : index
      %274 = vector.load %arg23[%c0_119, %c0_120, %c0_121] : memref<1x5x32xf32, #tpu.memory_space<vmem>>, vector<1x5x32xf32>
      %275 = vector.shape_cast %274 : vector<1x5x32xf32> to vector<5x32xf32>
      %276 = vector.shape_cast %273 : vector<5x32xf32> to vector<1x5x32xf32>
      tpu.vector_store %arg23[%c0_119, %c0_120, %c0_121], %276 {strides = array<i32>} : memref<1x5x32xf32, #tpu.memory_space<vmem>>, vector<1x5x32xf32>,
    } else {
    }
    return
  }
  func.func @transform_0(%arg0: i32, %arg1: i32) -> (i32, i32, i32) {
    %c0_i32 = arith.constant 0 : i32
    %c0_i32_0 = arith.constant 0 : i32
    %c0_i32_1 = arith.constant 0 : i32
    return %arg0, %c0_i32, %c0_i32_0 : i32, i32, i32
  }
  func.func @transform_1(%arg0: i32, %arg1: i32) -> (i32, i32) {
    %c0_i32 = arith.constant 0 : i32
    %c0_i32_0 = arith.constant 0 : i32
    %c0_i32_1 = arith.constant 0 : i32
    return %c0_i32, %c0_i32_0 : i32, i32
  }
  func.func @transform_2(%arg0: i32, %arg1: i32) -> (i32, i32) {
    %c0_i32 = arith.constant 0 : i32
    %c0_i32_0 = arith.constant 0 : i32
    %c0_i32_1 = arith.constant 0 : i32
    return %c0_i32, %c0_i32_0 : i32, i32
  }
  func.func @transform_3(%arg0: i32, %arg1: i32) -> (i32, i32, i32) {
    %c0_i32 = arith.constant 0 : i32
    %c0_i32_0 = arith.constant 0 : i32
    %c0_i32_1 = arith.constant 0 : i32
    return %arg1, %c0_i32, %c0_i32_0 : i32, i32, i32
  }
  func.func @transform_4(%arg0: i32, %arg1: i32) -> (i32, i32, i32) {
    %c0_i32 = arith.constant 0 : i32
    %c0_i32_0 = arith.constant 0 : i32
    %c0_i32_1 = arith.constant 0 : i32
    return %arg1, %c0_i32, %c0_i32_0 : i32, i32, i32
  }
  func.func @transform_5(%arg0: i32, %arg1: i32) -> (i32, i32, i32) {
    %c0_i32 = arith.constant 0 : i32
    %c0_i32_0 = arith.constant 0 : i32
    %c0_i32_1 = arith.constant 0 : i32
    return %arg1, %c0_i32, %c0_i32_0 : i32, i32, i32
  }
  func.func @transform_6(%arg0: i32, %arg1: i32) -> (i32, i32, i32) {
    %c0_i32 = arith.constant 0 : i32
    %c0_i32_0 = arith.constant 0 : i32
    %c0_i32_1 = arith.constant 0 : i32
    return %arg1, %c0_i32, %c0_i32_0 : i32, i32, i32
  }
  func.func @transform_7(%arg0: i32, %arg1: i32) -> (i32, i32, i32) {
    %c0_i32 = arith.constant 0 : i32
    %c0_i32_0 = arith.constant 0 : i32
    %c0_i32_1 = arith.constant 0 : i32
    return %arg1, %c0_i32, %c0_i32_0 : i32, i32, i32
  }
  func.func @transform_8(%arg0: i32, %arg1: i32) -> (i32, i32, i32) {
    %c0_i32 = arith.constant 0 : i32
    %c0_i32_0 = arith.constant 0 : i32
    %c0_i32_1 = arith.constant 0 : i32
    return %arg1, %c0_i32, %c0_i32_0 : i32, i32, i32
  }
  func.func @transform_9(%arg0: i32, %arg1: i32) -> (i32, i32, i32) {
    %c0_i32 = arith.constant 0 : i32
    %c0_i32_0 = arith.constant 0 : i32
    %c0_i32_1 = arith.constant 0 : i32
    return %arg1, %c0_i32, %c0_i32_0 : i32, i32, i32
  }
  func.func @transform_10(%arg0: i32, %arg1: i32) -> (i32, i32, i32) {
    %c0_i32 = arith.constant 0 : i32
    %c0_i32_0 = arith.constant 0 : i32
    %c0_i32_1 = arith.constant 0 : i32
    return %arg1, %c0_i32, %c0_i32_0 : i32, i32, i32
  }
  func.func @transform_11(%arg0: i32, %arg1: i32) -> (i32, i32, i32) {
    %c0_i32 = arith.constant 0 : i32
    %c0_i32_0 = arith.constant 0 : i32
    %c0_i32_1 = arith.constant 0 : i32
    return %arg1, %c0_i32, %c0_i32_0 : i32, i32, i32
  }
  func.func @transform_12(%arg0: i32, %arg1: i32) -> (i32, i32, i32) {
    %c0_i32 = arith.constant 0 : i32
    %c0_i32_0 = arith.constant 0 : i32
    %c0_i32_1 = arith.constant 0 : i32
    return %arg1, %c0_i32, %c0_i32_0 : i32, i32, i32
  }
  func.func @transform_13(%arg0: i32, %arg1: i32) -> (i32, i32, i32) {
    %c0_i32 = arith.constant 0 : i32
    %c0_i32_0 = arith.constant 0 : i32
    %c0_i32_1 = arith.constant 0 : i32
    return %arg1, %c0_i32, %c0_i32_0 : i32, i32, i32
  }
  func.func @transform_14(%arg0: i32, %arg1: i32) -> (i32, i32, i32) {
    %c0_i32 = arith.constant 0 : i32
    %c0_i32_0 = arith.constant 0 : i32
    %c0_i32_1 = arith.constant 0 : i32
    return %arg1, %c0_i32, %c0_i32_0 : i32, i32, i32
  }
  func.func @transform_15(%arg0: i32, %arg1: i32) -> (i32, i32, i32) {
    %c0_i32 = arith.constant 0 : i32
    %c0_i32_0 = arith.constant 0 : i32
    %c0_i32_1 = arith.constant 0 : i32
    return %arg1, %c0_i32, %c0_i32_0 : i32, i32, i32
  }
  func.func @transform_16(%arg0: i32, %arg1: i32) -> (i32, i32, i32) {
    %c0_i32 = arith.constant 0 : i32
    %c0_i32_0 = arith.constant 0 : i32
    %c0_i32_1 = arith.constant 0 : i32
    return %arg1, %c0_i32, %c0_i32_0 : i32, i32, i32
  }
  func.func @transform_17(%arg0: i32, %arg1: i32) -> (i32, i32, i32) {
    %c0_i32 = arith.constant 0 : i32
    %c0_i32_0 = arith.constant 0 : i32
    %c0_i32_1 = arith.constant 0 : i32
    return %arg1, %c0_i32, %c0_i32_0 : i32, i32, i32
  }
  func.func @transform_18(%arg0: i32, %arg1: i32) -> (i32, i32, i32) {
    %c0_i32 = arith.constant 0 : i32
    %c0_i32_0 = arith.constant 0 : i32
    %c0_i32_1 = arith.constant 0 : i32
    return %arg1, %c0_i32, %c0_i32_0 : i32, i32, i32
  }
  func.func @transform_19(%arg0: i32, %arg1: i32) -> (i32, i32) {
    %c0_i32 = arith.constant 0 : i32
    %c0_i32_0 = arith.constant 0 : i32
    %c0_i32_1 = arith.constant 0 : i32
    return %c0_i32, %c0_i32_0 : i32, i32
  }
  func.func @transform_20(%arg0: i32, %arg1: i32) -> (i32, i32) {
    %c0_i32 = arith.constant 0 : i32
    %c0_i32_0 = arith.constant 0 : i32
    %c0_i32_1 = arith.constant 0 : i32
    return %c0_i32, %c0_i32_0 : i32, i32
  }
  func.func @transform_21(%arg0: i32, %arg1: i32) -> (i32, i32, i32) {
    %c0_i32 = arith.constant 0 : i32
    %c0_i32_0 = arith.constant 0 : i32
    %c0_i32_1 = arith.constant 0 : i32
    return %arg0, %c0_i32, %c0_i32_0 : i32, i32, i32
  }
}

</mosaic_0001>

<llo_original>
// kernel: tpu_custom_call.1
$region0: #{tpu_custom_call.1}
  #allocation0 [shape = 'u32[]', space=smem, size = 0x4, offset = 0x4, fixed_abs, tag = 'smem constant byte address 0x4 - core index']
  #allocation1 [shape = 'u32[72,128]{1,0:T(1,128)}', space=vmem, size = 0x9000, scoped, tag = 'internal scratch']
  #allocation2 [shape = 'f32[5,32]{1,0:T(8,128)}', space=vmem, size = 0x1000, scoped, tag = 'scratch operand']
  %s0 = inlined_call_operand.vmem [shape: f32[2,5,257], index: 0, kind: input, shape index: {}]
  %s1 = inlined_call_operand.vmem [shape: f32[257,32], index: 1, kind: input, shape index: {}]
  %s2 = inlined_call_operand.vmem [shape: f32[1,32], index: 2, kind: input, shape index: {}]
  %s3 = inlined_call_operand.vmem [shape: f32[2,1,32], index: 3, kind: input, shape index: {}]
  %s4 = inlined_call_operand.vmem [shape: f32[2,1,32], index: 4, kind: input, shape index: {}]
  %s5 = inlined_call_operand.vmem [shape: f32[2,32,32], index: 5, kind: input, shape index: {}]
  %s6 = inlined_call_operand.vmem [shape: f32[2,1,32], index: 6, kind: input, shape index: {}]
  %s7 = inlined_call_operand.vmem [shape: f32[2,32,32], index: 7, kind: input, shape index: {}]
  %s8 = inlined_call_operand.vmem [shape: f32[2,1,32], index: 8, kind: input, shape index: {}]
  %s9 = inlined_call_operand.vmem [shape: f32[2,32,32], index: 9, kind: input, shape index: {}]
  %s10 = inlined_call_operand.vmem [shape: f32[2,1,32], index: 10, kind: input, shape index: {}]
  %s11 = inlined_call_operand.vmem [shape: f32[2,32,32], index: 11, kind: input, shape index: {}]
  %s12 = inlined_call_operand.vmem [shape: f32[2,1,32], index: 12, kind: input, shape index: {}]
  %s13 = inlined_call_operand.vmem [shape: f32[2,1,32], index: 13, kind: input, shape index: {}]
  %s14 = inlined_call_operand.vmem [shape: f32[2,1,32], index: 14, kind: input, shape index: {}]
  %s15 = inlined_call_operand.vmem [shape: f32[2,32,64], index: 15, kind: input, shape index: {}]
  %s16 = inlined_call_operand.vmem [shape: f32[2,1,64], index: 16, kind: input, shape index: {}]
  %s17 = inlined_call_operand.vmem [shape: f32[2,64,32], index: 17, kind: input, shape index: {}]
  %s18 = inlined_call_operand.vmem [shape: f32[2,1,32], index: 18, kind: input, shape index: {}]
  %s19 = inlined_call_operand.vmem [shape: f32[1,32], index: 19, kind: input, shape index: {}]
  %s20 = inlined_call_operand.vmem [shape: f32[1,32], index: 20, kind: input, shape index: {}]
  %s21 = inlined_call_operand.vmem [shape: f32[2,5,32], index: 21, kind: output, shape index: {}]
  %s22 = sld [smem:[#allocation0]]
  $region125: #{tpu_custom_call.1} parent=0
    _
  %s24 = ssub.s32 1, %s22
  %s25 = scalar_select 0, %s24, %s22
  loop: start=0, step=1, limit=6
  $region2: #{tpu_custom_call.1} parent=0 // loop_pre_header
    _
  $region3: #{tpu_custom_call.1} parent=0 // loop_header
    %s27 = sphi 0, %s31
    %p28 = scmp.ge.s32.totalorder %s27, 6
    %s34 = sphi 0, %s46
    %s35 = sphi 0, %s42
    %s36 = sphi 0, %s34
    %s37 = sphi 0, %s35
    %s38 = sphi 0, %s36
    %s39 = sphi 0, %s37
    %s49 = sphi 0, %s51
    %s52 = sphi 0, %s49
    %s53 = sphi 0, %s52
    %s69 = sphi 0, %s53
    %s73 = sphi 0, %s73
    %s75 = sphi 0, %s73
    %s76 = sphi 0, %s75
    %s90 = sphi 0, %s76
    %s94 = sphi 0, %s94
    %s96 = sphi 0, %s94
    %s97 = sphi 0, %s96
    %s111 = sphi 0, %s97
    %s117 = sphi 0, %s119
    %s120 = sphi 0, %s117
    %s121 = sphi 0, %s120
    %s137 = sphi 0, %s121
    %s143 = sphi 0, %s145
    %s146 = sphi 0, %s143
    %s147 = sphi 0, %s146
    %s163 = sphi 0, %s147
    %s169 = sphi 0, %s171
    %s172 = sphi 0, %s169
    %s173 = sphi 0, %s172
    %s189 = sphi 0, %s173
    %s195 = sphi 0, %s197
    %s198 = sphi 0, %s195
    %s199 = sphi 0, %s198
    %s215 = sphi 0, %s199
    %s221 = sphi 0, %s223
    %s224 = sphi 0, %s221
    %s225 = sphi 0, %s224
    %s241 = sphi 0, %s225
    %s247 = sphi 0, %s249
    %s250 = sphi 0, %s247
    %s251 = sphi 0, %s250
    %s267 = sphi 0, %s251
    %s273 = sphi 0, %s275
    %s276 = sphi 0, %s273
    %s277 = sphi 0, %s276
    %s293 = sphi 0, %s277
    %s299 = sphi 0, %s301
    %s302 = sphi 0, %s299
    %s303 = sphi 0, %s302
    %s319 = sphi 0, %s303
    %s325 = sphi 0, %s327
    %s328 = sphi 0, %s325
    %s329 = sphi 0, %s328
    %s345 = sphi 0, %s329
    %s351 = sphi 0, %s353
    %s354 = sphi 0, %s351
    %s355 = sphi 0, %s354
    %s371 = sphi 0, %s355
    %s377 = sphi 0, %s379
    %s380 = sphi 0, %s377
    %s381 = sphi 0, %s380
    %s397 = sphi 0, %s381
    %s403 = sphi 0, %s405
    %s406 = sphi 0, %s403
    %s407 = sphi 0, %s406
    %s423 = sphi 0, %s407
    %s429 = sphi 0, %s431
    %s432 = sphi 0, %s429
    %s433 = sphi 0, %s432
    %s449 = sphi 0, %s433
    %s455 = sphi 0, %s457
    %s458 = sphi 0, %s455
    %s459 = sphi 0, %s458
    %s475 = sphi 0, %s459
    %s481 = sphi 0, %s483
    %s484 = sphi 0, %s481
    %s485 = sphi 0, %s484
    %s501 = sphi 0, %s485
    %s507 = sphi 0, %s509
    %s510 = sphi 0, %s507
    %s511 = sphi 0, %s510
    %s527 = sphi 0, %s511
    %s531 = sphi 0, %s531
    %s533 = sphi 0, %s531
    %s534 = sphi 0, %s533
    %s548 = sphi 0, %s534
    %s552 = sphi 0, %s552
    %s554 = sphi 0, %s552
    %s555 = sphi 0, %s554
    %s569 = sphi 0, %s555
    %s575 = sphi 0, %s577
    %s578 = sphi 0, %s575
    %s579 = sphi 0, %s578
    %s595 = sphi 0, %s579
  $region4: #{tpu_custom_call.1} parent=0 // loop_header_branch
    %30 = sbr.rel (%p28) target = $region8
  $region5: #{tpu_custom_call.1} parent=0 // loop_body
    %s32 = ssub.s32 %s27, 1
    %s33 = ssub.s32 %s27, 2
    %s40 = sadd.s32 1, %s35
    %p41 = scmp.ge.s32.totalorder %s40, 2
    %s42 = scalar_select %p41, 0, %s40
    %s43 = sadd.s32 1, %s34
    %s44 = scalar_select %p41, %s43, %s34
    %p45 = scmp.ge.s32.totalorder %s44, 2
    %s46 = scalar_select %p45, 0, %s44
    %s47 = ssub.s32 %s34, %s46
    %p48 = scmp.eq.s32.totalorder %s47, 0
    %s50 = sadd.s32 %s49, 1
    %s51 = scalar_select %p48, %s49, %s50
    %p54 = pneg %p48
    %p55 = scmp.eq.s32.totalorder %s27, 3
    %p56 = por %p54, %p55
    %p57 = scmp.ne.s32.totalorder %s49, %s52
    %p58 = scmp.eq.s32.totalorder %s27, 0
    %p59 = por %p57, %p58
    %p60 = scmp.ne.s32.totalorder %s49, %s52
    %p61 = scmp.eq.s32.totalorder %s32, 3
    %p62 = por %p60, %p61
    %p63 = scmp.ne.s32.totalorder %s52, %s53
    %p64 = scmp.eq.s32.totalorder %s32, 0
    %p65 = por %p63, %p64
    %p66 = scmp.ne.s32.totalorder %s52, %s53
    %p67 = scmp.eq.s32.totalorder %s33, 3
    %p68 = por %p66, %p67
    %p70 = scmp.ne.s32.totalorder %s53, %s69
    %p71 = scmp.eq.s32.totalorder %s33, 0
    %p72 = por %p70, %p71
    %s74 = sadd.s32 %s73, 1
    %p77 = scmp.eq.s32.totalorder %s27, 3
    %p78 = scmp.ne.s32.totalorder %s73, %s75
    %p79 = scmp.eq.s32.totalorder %s27, 0
    %p80 = por %p78, %p79
    %p81 = scmp.ne.s32.totalorder %s73, %s75
    %p82 = scmp.eq.s32.totalorder %s32, 3
    %p83 = por %p81, %p82
    %p84 = scmp.ne.s32.totalorder %s75, %s76
    %p85 = scmp.eq.s32.totalorder %s32, 0
    %p86 = por %p84, %p85
    %p87 = scmp.ne.s32.totalorder %s75, %s76
    %p88 = scmp.eq.s32.totalorder %s33, 3
    %p89 = por %p87, %p88
    %p91 = scmp.ne.s32.totalorder %s76, %s90
    %p92 = scmp.eq.s32.totalorder %s33, 0
    %p93 = por %p91, %p92
    %s95 = sadd.s32 %s94, 1
    %p98 = scmp.eq.s32.totalorder %s27, 3
    %p99 = scmp.ne.s32.totalorder %s94, %s96
    %p100 = scmp.eq.s32.totalorder %s27, 0
    %p101 = por %p99, %p100
    %p102 = scmp.ne.s32.totalorder %s94, %s96
    %p103 = scmp.eq.s32.totalorder %s32, 3
    %p104 = por %p102, %p103
    %p105 = scmp.ne.s32.totalorder %s96, %s97
    %p106 = scmp.eq.s32.totalorder %s32, 0
    %p107 = por %p105, %p106
    %p108 = scmp.ne.s32.totalorder %s96, %s97
    %p109 = scmp.eq.s32.totalorder %s33, 3
    %p110 = por %p108, %p109
    %p112 = scmp.ne.s32.totalorder %s97, %s111
    %p113 = scmp.eq.s32.totalorder %s33, 0
    %p114 = por %p112, %p113
    %s115 = ssub.s32 %s35, %s42
    %p116 = scmp.eq.s32.totalorder %s115, 0
    %s118 = sadd.s32 %s117, 1
    %s119 = scalar_select %p116, %s117, %s118
    %p122 = pneg %p116
    %p123 = scmp.eq.s32.totalorder %s27, 3
    %p124 = por %p122, %p123
    %p125 = scmp.ne.s32.totalorder %s117, %s120
    %p126 = scmp.eq.s32.totalorder %s27, 0
    %p127 = por %p125, %p126
    %p128 = scmp.ne.s32.totalorder %s117, %s120
    %p129 = scmp.eq.s32.totalorder %s32, 3
    %p130 = por %p128, %p129
    %p131 = scmp.ne.s32.totalorder %s120, %s121
    %p132 = scmp.eq.s32.totalorder %s32, 0
    %p133 = por %p131, %p132
    %p134 = scmp.ne.s32.totalorder %s120, %s121
    %p135 = scmp.eq.s32.totalorder %s33, 3
    %p136 = por %p134, %p135
    %p138 = scmp.ne.s32.totalorder %s121, %s137
    %p139 = scmp.eq.s32.totalorder %s33, 0
    %p140 = por %p138, %p139
    %s141 = ssub.s32 %s35, %s42
    %p142 = scmp.eq.s32.totalorder %s141, 0
    %s144 = sadd.s32 %s143, 1
    %s145 = scalar_select %p142, %s143, %s144
    %p148 = pneg %p142
    %p149 = scmp.eq.s32.totalorder %s27, 3
    %p150 = por %p148, %p149
    %p151 = scmp.ne.s32.totalorder %s143, %s146
    %p152 = scmp.eq.s32.totalorder %s27, 0
    %p153 = por %p151, %p152
    %p154 = scmp.ne.s32.totalorder %s143, %s146
    %p155 = scmp.eq.s32.totalorder %s32, 3
    %p156 = por %p154, %p155
    %p157 = scmp.ne.s32.totalorder %s146, %s147
    %p158 = scmp.eq.s32.totalorder %s32, 0
    %p159 = por %p157, %p158
    %p160 = scmp.ne.s32.totalorder %s146, %s147
    %p161 = scmp.eq.s32.totalorder %s33, 3
    %p162 = por %p160, %p161
    %p164 = scmp.ne.s32.totalorder %s147, %s163
    %p165 = scmp.eq.s32.totalorder %s33, 0
    %p166 = por %p164, %p165
    %s167 = ssub.s32 %s35, %s42
    %p168 = scmp.eq.s32.totalorder %s167, 0
    %s170 = sadd.s32 %s169, 1
    %s171 = scalar_select %p168, %s169, %s170
    %p174 = pneg %p168
    %p175 = scmp.eq.s32.totalorder %s27, 3
    %p176 = por %p174, %p175
    %p177 = scmp.ne.s32.totalorder %s169, %s172
    %p178 = scmp.eq.s32.totalorder %s27, 0
    %p179 = por %p177, %p178
    %p180 = scmp.ne.s32.totalorder %s169, %s172
    %p181 = scmp.eq.s32.totalorder %s32, 3
    %p182 = por %p180, %p181
    %p183 = scmp.ne.s32.totalorder %s172, %s173
    %p184 = scmp.eq.s32.totalorder %s32, 0
    %p185 = por %p183, %p184
    %p186 = scmp.ne.s32.totalorder %s172, %s173
    %p187 = scmp.eq.s32.totalorder %s33, 3
    %p188 = por %p186, %p187
    %p190 = scmp.ne.s32.totalorder %s173, %s189
    %p191 = scmp.eq.s32.totalorder %s33, 0
    %p192 = por %p190, %p191
    %s193 = ssub.s32 %s35, %s42
    %p194 = scmp.eq.s32.totalorder %s193, 0
    %s196 = sadd.s32 %s195, 1
    %s197 = scalar_select %p194, %s195, %s196
    %p200 = pneg %p194
    %p201 = scmp.eq.s32.totalorder %s27, 3
    %p202 = por %p200, %p201
    %p203 = scmp.ne.s32.totalorder %s195, %s198
    %p204 = scmp.eq.s32.totalorder %s27, 0
    %p205 = por %p203, %p204
    %p206 = scmp.ne.s32.totalorder %s195, %s198
    %p207 = scmp.eq.s32.totalorder %s32, 3
    %p208 = por %p206, %p207
    %p209 = scmp.ne.s32.totalorder %s198, %s199
    %p210 = scmp.eq.s32.totalorder %s32, 0
    %p211 = por %p209, %p210
    %p212 = scmp.ne.s32.totalorder %s198, %s199
    %p213 = scmp.eq.s32.totalorder %s33, 3
    %p214 = por %p212, %p213
    %p216 = scmp.ne.s32.totalorder %s199, %s215
    %p217 = scmp.eq.s32.totalorder %s33, 0
    %p218 = por %p216, %p217
    %s219 = ssub.s32 %s35, %s42
    %p220 = scmp.eq.s32.totalorder %s219, 0
    %s222 = sadd.s32 %s221, 1
    %s223 = scalar_select %p220, %s221, %s222
    %p226 = pneg %p220
    %p227 = scmp.eq.s32.totalorder %s27, 3
    %p228 = por %p226, %p227
    %p229 = scmp.ne.s32.totalorder %s221, %s224
    %p230 = scmp.eq.s32.totalorder %s27, 0
    %p231 = por %p229, %p230
    %p232 = scmp.ne.s32.totalorder %s221, %s224
    %p233 = scmp.eq.s32.totalorder %s32, 3
    %p234 = por %p232, %p233
    %p235 = scmp.ne.s32.totalorder %s224, %s225
    %p236 = scmp.eq.s32.totalorder %s32, 0
    %p237 = por %p235, %p236
    %p238 = scmp.ne.s32.totalorder %s224, %s225
    %p239 = scmp.eq.s32.totalorder %s33, 3
    %p240 = por %p238, %p239
    %p242 = scmp.ne.s32.totalorder %s225, %s241
    %p243 = scmp.eq.s32.totalorder %s33, 0
    %p244 = por %p242, %p243
    %s245 = ssub.s32 %s35, %s42
    %p246 = scmp.eq.s32.totalorder %s245, 0
    %s248 = sadd.s32 %s247, 1
    %s249 = scalar_select %p246, %s247, %s248
    %p252 = pneg %p246
    %p253 = scmp.eq.s32.totalorder %s27, 3
    %p254 = por %p252, %p253
    %p255 = scmp.ne.s32.totalorder %s247, %s250
    %p256 = scmp.eq.s32.totalorder %s27, 0
    %p257 = por %p255, %p256
    %p258 = scmp.ne.s32.totalorder %s247, %s250
    %p259 = scmp.eq.s32.totalorder %s32, 3
    %p260 = por %p258, %p259
    %p261 = scmp.ne.s32.totalorder %s250, %s251
    %p262 = scmp.eq.s32.totalorder %s32, 0
    %p263 = por %p261, %p262
    %p264 = scmp.ne.s32.totalorder %s250, %s251
    %p265 = scmp.eq.s32.totalorder %s33, 3
    %p266 = por %p264, %p265
    %p268 = scmp.ne.s32.totalorder %s251, %s267
    %p269 = scmp.eq.s32.totalorder %s33, 0
    %p270 = por %p268, %p269
    %s271 = ssub.s32 %s35, %s42
    %p272 = scmp.eq.s32.totalorder %s271, 0
    %s274 = sadd.s32 %s273, 1
    %s275 = scalar_select %p272, %s273, %s274
    %p278 = pneg %p272
    %p279 = scmp.eq.s32.totalorder %s27, 3
    %p280 = por %p278, %p279
    %p281 = scmp.ne.s32.totalorder %s273, %s276
    %p282 = scmp.eq.s32.totalorder %s27, 0
    %p283 = por %p281, %p282
    %p284 = scmp.ne.s32.totalorder %s273, %s276
    %p285 = scmp.eq.s32.totalorder %s32, 3
    %p286 = por %p284, %p285
    %p287 = scmp.ne.s32.totalorder %s276, %s277
    %p288 = scmp.eq.s32.totalorder %s32, 0
    %p289 = por %p287, %p288
    %p290 = scmp.ne.s32.totalorder %s276, %s277
    %p291 = scmp.eq.s32.totalorder %s33, 3
    %p292 = por %p290, %p291
    %p294 = scmp.ne.s32.totalorder %s277, %s293
    %p295 = scmp.eq.s32.totalorder %s33, 0
    %p296 = por %p294, %p295
    %s297 = ssub.s32 %s35, %s42
    %p298 = scmp.eq.s32.totalorder %s297, 0
    %s300 = sadd.s32 %s299, 1
    %s301 = scalar_select %p298, %s299, %s300
    %p304 = pneg %p298
    %p305 = scmp.eq.s32.totalorder %s27, 3
    %p306 = por %p304, %p305
    %p307 = scmp.ne.s32.totalorder %s299, %s302
    %p308 = scmp.eq.s32.totalorder %s27, 0
    %p309 = por %p307, %p308
    %p310 = scmp.ne.s32.totalorder %s299, %s302
    %p311 = scmp.eq.s32.totalorder %s32, 3
    %p312 = por %p310, %p311
    %p313 = scmp.ne.s32.totalorder %s302, %s303
    %p314 = scmp.eq.s32.totalorder %s32, 0
    %p315 = por %p313, %p314
    %p316 = scmp.ne.s32.totalorder %s302, %s303
    %p317 = scmp.eq.s32.totalorder %s33, 3
    %p318 = por %p316, %p317
    %p320 = scmp.ne.s32.totalorder %s303, %s319
    %p321 = scmp.eq.s32.totalorder %s33, 0
    %p322 = por %p320, %p321
    %s323 = ssub.s32 %s35, %s42
    %p324 = scmp.eq.s32.totalorder %s323, 0
    %s326 = sadd.s32 %s325, 1
    %s327 = scalar_select %p324, %s325, %s326
    %p330 = pneg %p324
    %p331 = scmp.eq.s32.totalorder %s27, 3
    %p332 = por %p330, %p331
    %p333 = scmp.ne.s32.totalorder %s325, %s328
    %p334 = scmp.eq.s32.totalorder %s27, 0
    %p335 = por %p333, %p334
    %p336 = scmp.ne.s32.totalorder %s325, %s328
    %p337 = scmp.eq.s32.totalorder %s32, 3
    %p338 = por %p336, %p337
    %p339 = scmp.ne.s32.totalorder %s328, %s329
    %p340 = scmp.eq.s32.totalorder %s32, 0
    %p341 = por %p339, %p340
    %p342 = scmp.ne.s32.totalorder %s328, %s329
    %p343 = scmp.eq.s32.totalorder %s33, 3
    %p344 = por %p342, %p343
    %p346 = scmp.ne.s32.totalorder %s329, %s345
    %p347 = scmp.eq.s32.totalorder %s33, 0
    %p348 = por %p346, %p347
    %s349 = ssub.s32 %s35, %s42
    %p350 = scmp.eq.s32.totalorder %s349, 0
    %s352 = sadd.s32 %s351, 1
    %s353 = scalar_select %p350, %s351, %s352
    %p356 = pneg %p350
    %p357 = scmp.eq.s32.totalorder %s27, 3
    %p358 = por %p356, %p357
    %p359 = scmp.ne.s32.totalorder %s351, %s354
    %p360 = scmp.eq.s32.totalorder %s27, 0
    %p361 = por %p359, %p360
    %p362 = scmp.ne.s32.totalorder %s351, %s354
    %p363 = scmp.eq.s32.totalorder %s32, 3
    %p364 = por %p362, %p363
    %p365 = scmp.ne.s32.totalorder %s354, %s355
    %p366 = scmp.eq.s32.totalorder %s32, 0
    %p367 = por %p365, %p366
    %p368 = scmp.ne.s32.totalorder %s354, %s355
    %p369 = scmp.eq.s32.totalorder %s33, 3
    %p370 = por %p368, %p369
    %p372 = scmp.ne.s32.totalorder %s355, %s371
    %p373 = scmp.eq.s32.totalorder %s33, 0
    %p374 = por %p372, %p373
    %s375 = ssub.s32 %s35, %s42
    %p376 = scmp.eq.s32.totalorder %s375, 0
    %s378 = sadd.s32 %s377, 1
    %s379 = scalar_select %p376, %s377, %s378
    %p382 = pneg %p376
    %p383 = scmp.eq.s32.totalorder %s27, 3
    %p384 = por %p382, %p383
    %p385 = scmp.ne.s32.totalorder %s377, %s380
    %p386 = scmp.eq.s32.totalorder %s27, 0
    %p387 = por %p385, %p386
    %p388 = scmp.ne.s32.totalorder %s377, %s380
    %p389 = scmp.eq.s32.totalorder %s32, 3
    %p390 = por %p388, %p389
    %p391 = scmp.ne.s32.totalorder %s380, %s381
    %p392 = scmp.eq.s32.totalorder %s32, 0
    %p393 = por %p391, %p392
    %p394 = scmp.ne.s32.totalorder %s380, %s381
    %p395 = scmp.eq.s32.totalorder %s33, 3
    %p396 = por %p394, %p395
    %p398 = scmp.ne.s32.totalorder %s381, %s397
    %p399 = scmp.eq.s32.totalorder %s33, 0
    %p400 = por %p398, %p399
    %s401 = ssub.s32 %s35, %s42
    %p402 = scmp.eq.s32.totalorder %s401, 0
    %s404 = sadd.s32 %s403, 1
    %s405 = scalar_select %p402, %s403, %s404
    %p408 = pneg %p402
    %p409 = scmp.eq.s32.totalorder %s27, 3
    %p410 = por %p408, %p409
    %p411 = scmp.ne.s32.totalorder %s403, %s406
    %p412 = scmp.eq.s32.totalorder %s27, 0
    %p413 = por %p411, %p412
    %p414 = scmp.ne.s32.totalorder %s403, %s406
    %p415 = scmp.eq.s32.totalorder %s32, 3
    %p416 = por %p414, %p415
    %p417 = scmp.ne.s32.totalorder %s406, %s407
    %p418 = scmp.eq.s32.totalorder %s32, 0
    %p419 = por %p417, %p418
    %p420 = scmp.ne.s32.totalorder %s406, %s407
    %p421 = scmp.eq.s32.totalorder %s33, 3
    %p422 = por %p420, %p421
    %p424 = scmp.ne.s32.totalorder %s407, %s423
    %p425 = scmp.eq.s32.totalorder %s33, 0
    %p426 = por %p424, %p425
    %s427 = ssub.s32 %s35, %s42
    %p428 = scmp.eq.s32.totalorder %s427, 0
    %s430 = sadd.s32 %s429, 1
    %s431 = scalar_select %p428, %s429, %s430
    %p434 = pneg %p428
    %p435 = scmp.eq.s32.totalorder %s27, 3
    %p436 = por %p434, %p435
    %p437 = scmp.ne.s32.totalorder %s429, %s432
    %p438 = scmp.eq.s32.totalorder %s27, 0
    %p439 = por %p437, %p438
    %p440 = scmp.ne.s32.totalorder %s429, %s432
    %p441 = scmp.eq.s32.totalorder %s32, 3
    %p442 = por %p440, %p441
    %p443 = scmp.ne.s32.totalorder %s432, %s433
    %p444 = scmp.eq.s32.totalorder %s32, 0
    %p445 = por %p443, %p444
    %p446 = scmp.ne.s32.totalorder %s432, %s433
    %p447 = scmp.eq.s32.totalorder %s33, 3
    %p448 = por %p446, %p447
    %p450 = scmp.ne.s32.totalorder %s433, %s449
    %p451 = scmp.eq.s32.totalorder %s33, 0
    %p452 = por %p450, %p451
    %s453 = ssub.s32 %s35, %s42
    %p454 = scmp.eq.s32.totalorder %s453, 0
    %s456 = sadd.s32 %s455, 1
    %s457 = scalar_select %p454, %s455, %s456
    %p460 = pneg %p454
    %p461 = scmp.eq.s32.totalorder %s27, 3
    %p462 = por %p460, %p461
    %p463 = scmp.ne.s32.totalorder %s455, %s458
    %p464 = scmp.eq.s32.totalorder %s27, 0
    %p465 = por %p463, %p464
    %p466 = scmp.ne.s32.totalorder %s455, %s458
    %p467 = scmp.eq.s32.totalorder %s32, 3
    %p468 = por %p466, %p467
    %p469 = scmp.ne.s32.totalorder %s458, %s459
    %p470 = scmp.eq.s32.totalorder %s32, 0
    %p471 = por %p469, %p470
    %p472 = scmp.ne.s32.totalorder %s458, %s459
    %p473 = scmp.eq.s32.totalorder %s33, 3
    %p474 = por %p472, %p473
    %p476 = scmp.ne.s32.totalorder %s459, %s475
    %p477 = scmp.eq.s32.totalorder %s33, 0
    %p478 = por %p476, %p477
    %s479 = ssub.s32 %s35, %s42
    %p480 = scmp.eq.s32.totalorder %s479, 0
    %s482 = sadd.s32 %s481, 1
    %s483 = scalar_select %p480, %s481, %s482
    %p486 = pneg %p480
    %p487 = scmp.eq.s32.totalorder %s27, 3
    %p488 = por %p486, %p487
    %p489 = scmp.ne.s32.totalorder %s481, %s484
    %p490 = scmp.eq.s32.totalorder %s27, 0
    %p491 = por %p489, %p490
    %p492 = scmp.ne.s32.totalorder %s481, %s484
    %p493 = scmp.eq.s32.totalorder %s32, 3
    %p494 = por %p492, %p493
    %p495 = scmp.ne.s32.totalorder %s484, %s485
    %p496 = scmp.eq.s32.totalorder %s32, 0
    %p497 = por %p495, %p496
    %p498 = scmp.ne.s32.totalorder %s484, %s485
    %p499 = scmp.eq.s32.totalorder %s33, 3
    %p500 = por %p498, %p499
    %p502 = scmp.ne.s32.totalorder %s485, %s501
    %p503 = scmp.eq.s32.totalorder %s33, 0
    %p504 = por %p502, %p503
    %s505 = ssub.s32 %s35, %s42
    %p506 = scmp.eq.s32.totalorder %s505, 0
    %s508 = sadd.s32 %s507, 1
    %s509 = scalar_select %p506, %s507, %s508
    %p512 = pneg %p506
    %p513 = scmp.eq.s32.totalorder %s27, 3
    %p514 = por %p512, %p513
    %p515 = scmp.ne.s32.totalorder %s507, %s510
    %p516 = scmp.eq.s32.totalorder %s27, 0
    %p517 = por %p515, %p516
    %p518 = scmp.ne.s32.totalorder %s507, %s510
    %p519 = scmp.eq.s32.totalorder %s32, 3
    %p520 = por %p518, %p519
    %p521 = scmp.ne.s32.totalorder %s510, %s511
    %p522 = scmp.eq.s32.totalorder %s32, 0
    %p523 = por %p521, %p522
    %p524 = scmp.ne.s32.totalorder %s510, %s511
    %p525 = scmp.eq.s32.totalorder %s33, 3
    %p526 = por %p524, %p525
    %p528 = scmp.ne.s32.totalorder %s511, %s527
    %p529 = scmp.eq.s32.totalorder %s33, 0
    %p530 = por %p528, %p529
    %s532 = sadd.s32 %s531, 1
    %p535 = scmp.eq.s32.totalorder %s27, 3
    %p536 = scmp.ne.s32.totalorder %s531, %s533
    %p537 = scmp.eq.s32.totalorder %s27, 0
    %p538 = por %p536, %p537
    %p539 = scmp.ne.s32.totalorder %s531, %s533
    %p540 = scmp.eq.s32.totalorder %s32, 3
    %p541 = por %p539, %p540
    %p542 = scmp.ne.s32.totalorder %s533, %s534
    %p543 = scmp.eq.s32.totalorder %s32, 0
    %p544 = por %p542, %p543
    %p545 = scmp.ne.s32.totalorder %s533, %s534
    %p546 = scmp.eq.s32.totalorder %s33, 3
    %p547 = por %p545, %p546
    %p549 = scmp.ne.s32.totalorder %s534, %s548
    %p550 = scmp.eq.s32.totalorder %s33, 0
    %p551 = por %p549, %p550
    %s553 = sadd.s32 %s552, 1
    %p556 = scmp.eq.s32.totalorder %s27, 3
    %p557 = scmp.ne.s32.totalorder %s552, %s554
    %p558 = scmp.eq.s32.totalorder %s27, 0
    %p559 = por %p557, %p558
    %p560 = scmp.ne.s32.totalorder %s552, %s554
    %p561 = scmp.eq.s32.totalorder %s32, 3
    %p562 = por %p560, %p561
    %p563 = scmp.ne.s32.totalorder %s554, %s555
    %p564 = scmp.eq.s32.totalorder %s32, 0
    %p565 = por %p563, %p564
    %p566 = scmp.ne.s32.totalorder %s554, %s555
    %p567 = scmp.eq.s32.totalorder %s33, 3
    %p568 = por %p566, %p567
    %p570 = scmp.ne.s32.totalorder %s555, %s569
    %p571 = scmp.eq.s32.totalorder %s33, 0
    %p572 = por %p570, %p571
    %s573 = ssub.s32 %s34, %s46
    %p574 = scmp.eq.s32.totalorder %s573, 0
    %s576 = sadd.s32 %s575, 1
    %s577 = scalar_select %p574, %s575, %s576
    %p580 = pneg %p574
    %p581 = scmp.eq.s32.totalorder %s27, 3
    %p582 = por %p580, %p581
    %p583 = scmp.ne.s32.totalorder %s575, %s578
    %p584 = scmp.eq.s32.totalorder %s27, 0
    %p585 = por %p583, %p584
    %p586 = scmp.ne.s32.totalorder %s575, %s578
    %p587 = scmp.eq.s32.totalorder %s32, 3
    %p588 = por %p586, %p587
    %p589 = scmp.ne.s32.totalorder %s578, %s579
    %p590 = scmp.eq.s32.totalorder %s32, 0
    %p591 = por %p589, %p590
    %p592 = scmp.ne.s32.totalorder %s578, %s579
    %p593 = scmp.eq.s32.totalorder %s33, 3
    %p594 = por %p592, %p593
    %p596 = scmp.ne.s32.totalorder %s579, %s595
    %p597 = scmp.eq.s32.totalorder %s33, 0
    %p598 = por %p596, %p597
    %p599 = scmp.le.s32.totalorder 1, %s27
    %p600 = scmp.lt.s32.totalorder %s27, 5
    %p601 = pnand %p599, %p600
    %p602 = pneg %p601
    // Predicated region
    $region9: #{tpu_custom_call.1} parent=5 // pred_check
      _
    $region10: #{tpu_custom_call.1} parent=5 // pred_check_branch
      %604 = sbr.rel (%p601) target = $region12
    $region11: #{tpu_custom_call.1} parent=5 // pred_region
      %s605 = ssub.s32 %s27, 1
      // Predicated region
      $region13: #{tpu_custom_call.1} parent=11 // pred_check
        %p606 = pneg %p86
      $region14: #{tpu_custom_call.1} parent=11 // pred_check_branch
        %608 = sbr.rel (%p606) target = $region16
      $region15: #{tpu_custom_call.1} parent=11 // pred_region
        _
      $region16: #{tpu_custom_call.1} parent=11 // pred_fallthru
        _
      // Predicated region
      $region17: #{tpu_custom_call.1} parent=11 // pred_check
        %p609 = pneg %p107
      $region18: #{tpu_custom_call.1} parent=11 // pred_check_branch
        %611 = sbr.rel (%p609) target = $region20
      $region19: #{tpu_custom_call.1} parent=11 // pred_region
        _
      $region20: #{tpu_custom_call.1} parent=11 // pred_fallthru
        _
      // Predicated region
      $region21: #{tpu_custom_call.1} parent=11 // pred_check
        %p612 = pneg %p544
      $region22: #{tpu_custom_call.1} parent=11 // pred_check_branch
        %614 = sbr.rel (%p612) target = $region24
      $region23: #{tpu_custom_call.1} parent=11 // pred_region
        _
      $region24: #{tpu_custom_call.1} parent=11 // pred_fallthru
        _
      // Predicated region
      $region25: #{tpu_custom_call.1} parent=11 // pred_check
        %p615 = pneg %p565
      $region26: #{tpu_custom_call.1} parent=11 // pred_check_branch
        %617 = sbr.rel (%p615) target = $region28
      $region27: #{tpu_custom_call.1} parent=11 // pred_region
        _
      $region28: #{tpu_custom_call.1} parent=11 // pred_fallthru
        _
    $region12: #{tpu_custom_call.1} parent=5 // pred_fallthru
      _
    %p618 = scmp.lt.s32.totalorder %s27, 4
    // Predicated region
    $region29: #{tpu_custom_call.1} parent=5 // pred_check
      %p619 = pneg %p618
    $region30: #{tpu_custom_call.1} parent=5 // pred_check_branch
      %621 = sbr.rel (%p619) target = $region32
    $region31: #{tpu_custom_call.1} parent=5 // pred_region
      // Predicated region
      $region33: #{tpu_custom_call.1} parent=31 // pred_check
        %p622 = pneg %p59
      $region34: #{tpu_custom_call.1} parent=31 // pred_check_branch
        %624 = sbr.rel (%p622) target = $region36
      $region35: #{tpu_custom_call.1} parent=31 // pred_region
        %p625 = scmp.lt.s32.totalorder %s34, 1
        %s626 = scalar_select %p625, %s34, 1
        %s627 = smul.addr %s626, 3
        %s628 = smul.addr %s627, 8
        %s629 = scalar_lea.vmem %s0, %s628
      $region36: #{tpu_custom_call.1} parent=31 // pred_fallthru
        _
      // Predicated region
      $region37: #{tpu_custom_call.1} parent=31 // pred_check
        %p630 = pneg %p127
      $region38: #{tpu_custom_call.1} parent=31 // pred_check_branch
        %632 = sbr.rel (%p630) target = $region40
      $region39: #{tpu_custom_call.1} parent=31 // pred_region
        %p633 = scmp.lt.s32.totalorder %s35, 1
        %s634 = scalar_select %p633, %s35, 1
        %s635 = scalar_lea.vmem %s3, %s634
      $region40: #{tpu_custom_call.1} parent=31 // pred_fallthru
        _
      // Predicated region
      $region41: #{tpu_custom_call.1} parent=31 // pred_check
        %p636 = pneg %p153
      $region42: #{tpu_custom_call.1} parent=31 // pred_check_branch
        %638 = sbr.rel (%p636) target = $region44
      $region43: #{tpu_custom_call.1} parent=31 // pred_region
        %p639 = scmp.lt.s32.totalorder %s35, 1
        %s640 = scalar_select %p639, %s35, 1
        %s641 = scalar_lea.vmem %s4, %s640
      $region44: #{tpu_custom_call.1} parent=31 // pred_fallthru
        _
      // Predicated region
      $region45: #{tpu_custom_call.1} parent=31 // pred_check
        %p642 = pneg %p179
      $region46: #{tpu_custom_call.1} parent=31 // pred_check_branch
        %644 = sbr.rel (%p642) target = $region48
      $region47: #{tpu_custom_call.1} parent=31 // pred_region
        %p645 = scmp.lt.s32.totalorder %s35, 1
        %s646 = scalar_select %p645, %s35, 1
        %s647 = smul.addr %s646, 4
        %s648 = smul.addr %s647, 8
        %s649 = scalar_lea.vmem %s5, %s648
      $region48: #{tpu_custom_call.1} parent=31 // pred_fallthru
        _
      // Predicated region
      $region49: #{tpu_custom_call.1} parent=31 // pred_check
        %p650 = pneg %p205
      $region50: #{tpu_custom_call.1} parent=31 // pred_check_branch
        %652 = sbr.rel (%p650) target = $region52
      $region51: #{tpu_custom_call.1} parent=31 // pred_region
        %p653 = scmp.lt.s32.totalorder %s35, 1
        %s654 = scalar_select %p653, %s35, 1
        %s655 = scalar_lea.vmem %s6, %s654
      $region52: #{tpu_custom_call.1} parent=31 // pred_fallthru
        _
      // Predicated region
      $region53: #{tpu_custom_call.1} parent=31 // pred_check
        %p656 = pneg %p231
      $region54: #{tpu_custom_call.1} parent=31 // pred_check_branch
        %658 = sbr.rel (%p656) target = $region56
      $region55: #{tpu_custom_call.1} parent=31 // pred_region
        %p659 = scmp.lt.s32.totalorder %s35, 1
        %s660 = scalar_select %p659, %s35, 1
        %s661 = smul.addr %s660, 4
        %s662 = smul.addr %s661, 8
        %s663 = scalar_lea.vmem %s7, %s662
      $region56: #{tpu_custom_call.1} parent=31 // pred_fallthru
        _
      // Predicated region
      $region57: #{tpu_custom_call.1} parent=31 // pred_check
        %p664 = pneg %p257
      $region58: #{tpu_custom_call.1} parent=31 // pred_check_branch
        %666 = sbr.rel (%p664) target = $region60
      $region59: #{tpu_custom_call.1} parent=31 // pred_region
        %p667 = scmp.lt.s32.totalorder %s35, 1
        %s668 = scalar_select %p667, %s35, 1
        %s669 = scalar_lea.vmem %s8, %s668
      $region60: #{tpu_custom_call.1} parent=31 // pred_fallthru
        _
      // Predicated region
      $region61: #{tpu_custom_call.1} parent=31 // pred_check
        %p670 = pneg %p283
      $region62: #{tpu_custom_call.1} parent=31 // pred_check_branch
        %672 = sbr.rel (%p670) target = $region64
      $region63: #{tpu_custom_call.1} parent=31 // pred_region
        %p673 = scmp.lt.s32.totalorder %s35, 1
        %s674 = scalar_select %p673, %s35, 1
        %s675 = smul.addr %s674, 4
        %s676 = smul.addr %s675, 8
        %s677 = scalar_lea.vmem %s9, %s676
      $region64: #{tpu_custom_call.1} parent=31 // pred_fallthru
        _
      // Predicated region
      $region65: #{tpu_custom_call.1} parent=31 // pred_check
        %p678 = pneg %p309
      $region66: #{tpu_custom_call.1} parent=31 // pred_check_branch
        %680 = sbr.rel (%p678) target = $region68
      $region67: #{tpu_custom_call.1} parent=31 // pred_region
        %p681 = scmp.lt.s32.totalorder %s35, 1
        %s682 = scalar_select %p681, %s35, 1
        %s683 = scalar_lea.vmem %s10, %s682
      $region68: #{tpu_custom_call.1} parent=31 // pred_fallthru
        _
      // Predicated region
      $region69: #{tpu_custom_call.1} parent=31 // pred_check
        %p684 = pneg %p335
      $region70: #{tpu_custom_call.1} parent=31 // pred_check_branch
        %686 = sbr.rel (%p684) target = $region72
      $region71: #{tpu_custom_call.1} parent=31 // pred_region
        %p687 = scmp.lt.s32.totalorder %s35, 1
        %s688 = scalar_select %p687, %s35, 1
        %s689 = smul.addr %s688, 4
        %s690 = smul.addr %s689, 8
        %s691 = scalar_lea.vmem %s11, %s690
      $region72: #{tpu_custom_call.1} parent=31 // pred_fallthru
        _
      // Predicated region
      $region73: #{tpu_custom_call.1} parent=31 // pred_check
        %p692 = pneg %p361
      $region74: #{tpu_custom_call.1} parent=31 // pred_check_branch
        %694 = sbr.rel (%p692) target = $region76
      $region75: #{tpu_custom_call.1} parent=31 // pred_region
        %p695 = scmp.lt.s32.totalorder %s35, 1
        %s696 = scalar_select %p695, %s35, 1
        %s697 = scalar_lea.vmem %s12, %s696
      $region76: #{tpu_custom_call.1} parent=31 // pred_fallthru
        _
      // Predicated region
      $region77: #{tpu_custom_call.1} parent=31 // pred_check
        %p698 = pneg %p387
      $region78: #{tpu_custom_call.1} parent=31 // pred_check_branch
        %700 = sbr.rel (%p698) target = $region80
      $region79: #{tpu_custom_call.1} parent=31 // pred_region
        %p701 = scmp.lt.s32.totalorder %s35, 1
        %s702 = scalar_select %p701, %s35, 1
        %s703 = scalar_lea.vmem %s13, %s702
      $region80: #{tpu_custom_call.1} parent=31 // pred_fallthru
        _
      // Predicated region
      $region81: #{tpu_custom_call.1} parent=31 // pred_check
        %p704 = pneg %p413
      $region82: #{tpu_custom_call.1} parent=31 // pred_check_branch
        %706 = sbr.rel (%p704) target = $region84
      $region83: #{tpu_custom_call.1} parent=31 // pred_region
        %p707 = scmp.lt.s32.totalorder %s35, 1
        %s708 = scalar_select %p707, %s35, 1
        %s709 = scalar_lea.vmem %s14, %s708
      $region84: #{tpu_custom_call.1} parent=31 // pred_fallthru
        _
      // Predicated region
      $region85: #{tpu_custom_call.1} parent=31 // pred_check
        %p710 = pneg %p439
      $region86: #{tpu_custom_call.1} parent=31 // pred_check_branch
        %712 = sbr.rel (%p710) target = $region88
      $region87: #{tpu_custom_call.1} parent=31 // pred_region
        %p713 = scmp.lt.s32.totalorder %s35, 1
        %s714 = scalar_select %p713, %s35, 1
        %s715 = smul.addr %s714, 4
        %s716 = smul.addr %s715, 8
        %s717 = scalar_lea.vmem %s15, %s716
      $region88: #{tpu_custom_call.1} parent=31 // pred_fallthru
        _
      // Predicated region
      $region89: #{tpu_custom_call.1} parent=31 // pred_check
        %p718 = pneg %p465
      $region90: #{tpu_custom_call.1} parent=31 // pred_check_branch
        %720 = sbr.rel (%p718) target = $region92
      $region91: #{tpu_custom_call.1} parent=31 // pred_region
        %p721 = scmp.lt.s32.totalorder %s35, 1
        %s722 = scalar_select %p721, %s35, 1
        %s723 = scalar_lea.vmem %s16, %s722
      $region92: #{tpu_custom_call.1} parent=31 // pred_fallthru
        _
      // Predicated region
      $region93: #{tpu_custom_call.1} parent=31 // pred_check
        %p724 = pneg %p491
      $region94: #{tpu_custom_call.1} parent=31 // pred_check_branch
        %726 = sbr.rel (%p724) target = $region96
      $region95: #{tpu_custom_call.1} parent=31 // pred_region
        %p727 = scmp.lt.s32.totalorder %s35, 1
        %s728 = scalar_select %p727, %s35, 1
        %s729 = smul.addr %s728, 8
        %s730 = smul.addr %s729, 8
        %s731 = scalar_lea.vmem %s17, %s730
      $region96: #{tpu_custom_call.1} parent=31 // pred_fallthru
        _
      // Predicated region
      $region97: #{tpu_custom_call.1} parent=31 // pred_check
        %p732 = pneg %p517
      $region98: #{tpu_custom_call.1} parent=31 // pred_check_branch
        %734 = sbr.rel (%p732) target = $region100
      $region99: #{tpu_custom_call.1} parent=31 // pred_region
        %p735 = scmp.lt.s32.totalorder %s35, 1
        %s736 = scalar_select %p735, %s35, 1
        %s737 = scalar_lea.vmem %s18, %s736
      $region100: #{tpu_custom_call.1} parent=31 // pred_fallthru
        _
    $region32: #{tpu_custom_call.1} parent=5 // pred_fallthru
      _
    %p738 = scmp.le.s32.totalorder 1, %s27
    %p739 = scmp.lt.s32.totalorder %s27, 5
    %p740 = pnand %p738, %p739
    %p741 = pneg %p740
    // Predicated region
    $region101: #{tpu_custom_call.1} parent=5 // pred_check
      _
    $region102: #{tpu_custom_call.1} parent=5 // pred_check_branch
      %743 = sbr.rel (%p740) target = $region104
    $region103: #{tpu_custom_call.1} parent=5 // pred_region
      %s744 = ssub.s32 %s27, 1
      %p745 = scmp.lt.s32.totalorder %s36, 1
      %s746 = scalar_select %p745, %s36, 1
      %s747 = smul.addr %s746, 3
      %s748 = smul.addr %s747, 8
      %s749 = scalar_lea.vmem %s0, %s748
      %p750 = pneg %p65
      %p751 = pneg %p62
      %p752 = pneg %p86
      %p753 = pneg %p83
      %p754 = pneg %p107
      %p755 = pneg %p104
      %p756 = scmp.lt.s32.totalorder %s37, 1
      %s757 = scalar_select %p756, %s37, 1
      %s758 = scalar_lea.vmem %s3, %s757
      %p759 = pneg %p133
      %p760 = pneg %p130
      %p761 = scmp.lt.s32.totalorder %s37, 1
      %s762 = scalar_select %p761, %s37, 1
      %s763 = scalar_lea.vmem %s4, %s762
      %p764 = pneg %p159
      %p765 = pneg %p156
      %p766 = scmp.lt.s32.totalorder %s37, 1
      %s767 = scalar_select %p766, %s37, 1
      %s768 = smul.addr %s767, 4
      %s769 = smul.addr %s768, 8
      %s770 = scalar_lea.vmem %s5, %s769
      %p771 = pneg %p185
      %p772 = pneg %p182
      %p773 = scmp.lt.s32.totalorder %s37, 1
      %s774 = scalar_select %p773, %s37, 1
      %s775 = scalar_lea.vmem %s6, %s774
      %p776 = pneg %p211
      %p777 = pneg %p208
      %p778 = scmp.lt.s32.totalorder %s37, 1
      %s779 = scalar_select %p778, %s37, 1
      %s780 = smul.addr %s779, 4
      %s781 = smul.addr %s780, 8
      %s782 = scalar_lea.vmem %s7, %s781
      %p783 = pneg %p237
      %p784 = pneg %p234
      %p785 = scmp.lt.s32.totalorder %s37, 1
      %s786 = scalar_select %p785, %s37, 1
      %s787 = scalar_lea.vmem %s8, %s786
      %p788 = pneg %p263
      %p789 = pneg %p260
      %p790 = scmp.lt.s32.totalorder %s37, 1
      %s791 = scalar_select %p790, %s37, 1
      %s792 = smul.addr %s791, 4
      %s793 = smul.addr %s792, 8
      %s794 = scalar_lea.vmem %s9, %s793
      %p795 = pneg %p289
      %p796 = pneg %p286
      %p797 = scmp.lt.s32.totalorder %s37, 1
      %s798 = scalar_select %p797, %s37, 1
      %s799 = scalar_lea.vmem %s10, %s798
      %p800 = pneg %p315
      %p801 = pneg %p312
      %p802 = scmp.lt.s32.totalorder %s37, 1
      %s803 = scalar_select %p802, %s37, 1
      %s804 = smul.addr %s803, 4
      %s805 = smul.addr %s804, 8
      %s806 = scalar_lea.vmem %s11, %s805
      %p807 = pneg %p341
      %p808 = pneg %p338
      %p809 = scmp.lt.s32.totalorder %s37, 1
      %s810 = scalar_select %p809, %s37, 1
      %s811 = scalar_lea.vmem %s12, %s810
      %p812 = pneg %p367
      %p813 = pneg %p364
      %p814 = scmp.lt.s32.totalorder %s37, 1
      %s815 = scalar_select %p814, %s37, 1
      %s816 = scalar_lea.vmem %s13, %s815
      %p817 = pneg %p393
      %p818 = pneg %p390
      %p819 = scmp.lt.s32.totalorder %s37, 1
      %s820 = scalar_select %p819, %s37, 1
      %s821 = scalar_lea.vmem %s14, %s820
      %p822 = pneg %p419
      %p823 = pneg %p416
      %p824 = scmp.lt.s32.totalorder %s37, 1
      %s825 = scalar_select %p824, %s37, 1
      %s826 = smul.addr %s825, 4
      %s827 = smul.addr %s826, 8
      %s828 = scalar_lea.vmem %s15, %s827
      %p829 = pneg %p445
      %p830 = pneg %p442
      %p831 = scmp.lt.s32.totalorder %s37, 1
      %s832 = scalar_select %p831, %s37, 1
      %s833 = scalar_lea.vmem %s16, %s832
      %p834 = pneg %p471
      %p835 = pneg %p468
      %p836 = scmp.lt.s32.totalorder %s37, 1
      %s837 = scalar_select %p836, %s37, 1
      %s838 = smul.addr %s837, 8
      %s839 = smul.addr %s838, 8
      %s840 = scalar_lea.vmem %s17, %s839
      %p841 = pneg %p497
      %p842 = pneg %p494
      %p843 = scmp.lt.s32.totalorder %s37, 1
      %s844 = scalar_select %p843, %s37, 1
      %s845 = scalar_lea.vmem %s18, %s844
      %p846 = pneg %p523
      %p847 = pneg %p520
      %p848 = pneg %p544
      %p849 = pneg %p541
      %p850 = pneg %p565
      %p851 = pneg %p562
      %p852 = pneg %p591
      %p853 = pneg %p588
      %p854 = scmp.lt.s32.totalorder %s36, 1
      %s855 = scalar_select %p854, %s36, 1
      %s856 = smul.addr %s855, 8
      %s857 = scalar_lea.vmem %s21, %s856
      %p858 = scmp.lt.s32.totalorder %s36, 1
      %s859 = scalar_select %p858, %s36, 1
      %s860 = smul.addr %s859, 3
      %s861 = smul.addr %s860, 8
      %s862 = scalar_lea.vmem %s0, %s861
      %p863 = scmp.lt.s32.totalorder %s37, 1
      %s864 = scalar_select %p863, %s37, 1
      %s865 = scalar_lea.vmem %s3, %s864
      %p866 = scmp.lt.s32.totalorder %s37, 1
      %s867 = scalar_select %p866, %s37, 1
      %s868 = scalar_lea.vmem %s4, %s867
      %p869 = scmp.lt.s32.totalorder %s37, 1
      %s870 = scalar_select %p869, %s37, 1
      %s871 = smul.addr %s870, 4
      %s872 = smul.addr %s871, 8
      %s873 = scalar_lea.vmem %s5, %s872
      %p874 = scmp.lt.s32.totalorder %s37, 1
      %s875 = scalar_select %p874, %s37, 1
      %s876 = scalar_lea.vmem %s6, %s875
      %p877 = scmp.lt.s32.totalorder %s37, 1
      %s878 = scalar_select %p877, %s37, 1
      %s879 = smul.addr %s878, 4
      %s880 = smul.addr %s879, 8
      %s881 = scalar_lea.vmem %s7, %s880
      %p882 = scmp.lt.s32.totalorder %s37, 1
      %s883 = scalar_select %p882, %s37, 1
      %s884 = scalar_lea.vmem %s8, %s883
      %p885 = scmp.lt.s32.totalorder %s37, 1
      %s886 = scalar_select %p885, %s37, 1
      %s887 = smul.addr %s886, 4
      %s888 = smul.addr %s887, 8
      %s889 = scalar_lea.vmem %s9, %s888
      %p890 = scmp.lt.s32.totalorder %s37, 1
      %s891 = scalar_select %p890, %s37, 1
      %s892 = scalar_lea.vmem %s10, %s891
      %p893 = scmp.lt.s32.totalorder %s37, 1
      %s894 = scalar_select %p893, %s37, 1
      %s895 = smul.addr %s894, 4
      %s896 = smul.addr %s895, 8
      %s897 = scalar_lea.vmem %s11, %s896
      %p898 = scmp.lt.s32.totalorder %s37, 1
      %s899 = scalar_select %p898, %s37, 1
      %s900 = scalar_lea.vmem %s12, %s899
      %p901 = scmp.lt.s32.totalorder %s37, 1
      %s902 = scalar_select %p901, %s37, 1
      %s903 = scalar_lea.vmem %s13, %s902
      %p904 = scmp.lt.s32.totalorder %s37, 1
      %s905 = scalar_select %p904, %s37, 1
      %s906 = scalar_lea.vmem %s14, %s905
      %p907 = scmp.lt.s32.totalorder %s37, 1
      %s908 = scalar_select %p907, %s37, 1
      %s909 = smul.addr %s908, 4
      %s910 = smul.addr %s909, 8
      %s911 = scalar_lea.vmem %s15, %s910
      %p912 = scmp.lt.s32.totalorder %s37, 1
      %s913 = scalar_select %p912, %s37, 1
      %s914 = scalar_lea.vmem %s16, %s913
      %p915 = scmp.lt.s32.totalorder %s37, 1
      %s916 = scalar_select %p915, %s37, 1
      %s917 = smul.addr %s916, 8
      %s918 = smul.addr %s917, 8
      %s919 = scalar_lea.vmem %s17, %s918
      %p920 = scmp.lt.s32.totalorder %s37, 1
      %s921 = scalar_select %p920, %s37, 1
      %s922 = scalar_lea.vmem %s18, %s921
      %p923 = scmp.lt.s32.totalorder %s36, 1
      %s924 = scalar_select %p923, %s36, 1
      %s925 = smul.addr %s924, 8
      %s926 = scalar_lea.vmem %s21, %s925
      %p927 = scmp.eq.s32.totalorder %s37, 0
      // Predicated region
      $region105: #{tpu_custom_call.1} parent=103 // pred_check
        %p928 = pneg %p927
      $region106: #{tpu_custom_call.1} parent=103 // pred_check_branch
        %930 = sbr.rel (%p928) target = $region108
      $region107: #{tpu_custom_call.1} parent=103 // pred_region
        %v931 = vld [vmem:[%s862] sm:$0x1f]
        %v932 = vld [vmem:[%s862 + $0x8] sm:$0x1f]
        %v933 = vld [vmem:[%s862 + $0x10] sm:$0x1f]
        %v934 = vld [vmem:[%s1] sm:$0xff]
        %v935 = vld [vmem:[%s1 + $0x8] sm:$0xff]
        %v936 = vld [vmem:[%s1 + $0x10] sm:$0xff]
        %v937 = vld [vmem:[%s1 + $0x18] sm:$0xff]
        %v938 = vld [vmem:[%s1 + $0x20] sm:$0xff]
        %v939 = vld [vmem:[%s1 + $0x28] sm:$0xff]
        %v940 = vld [vmem:[%s1 + $0x30] sm:$0xff]
        %v941 = vld [vmem:[%s1 + $0x38] sm:$0xff]
        %v942 = vld [vmem:[%s1 + $0x40] sm:$0xff]
        %v943 = vld [vmem:[%s1 + $0x48] sm:$0xff]
        %v944 = vld [vmem:[%s1 + $0x50] sm:$0xff]
        %v945 = vld [vmem:[%s1 + $0x58] sm:$0xff]
        %v946 = vld [vmem:[%s1 + $0x60] sm:$0xff]
        %v947 = vld [vmem:[%s1 + $0x68] sm:$0xff]
        %v948 = vld [vmem:[%s1 + $0x70] sm:$0xff]
        %v949 = vld [vmem:[%s1 + $0x78] sm:$0xff]
        %v950 = vld [vmem:[%s1 + $0x80] sm:$0xff]
        %v951 = vld [vmem:[%s1 + $0x88] sm:$0xff]
        %v952 = vld [vmem:[%s1 + $0x90] sm:$0xff]
        %v953 = vld [vmem:[%s1 + $0x98] sm:$0xff]
        %v954 = vld [vmem:[%s1 + $0xa0] sm:$0xff]
        %v955 = vld [vmem:[%s1 + $0xa8] sm:$0xff]
        %v956 = vld [vmem:[%s1 + $0xb0] sm:$0xff]
        %v957 = vld [vmem:[%s1 + $0xb8] sm:$0xff]
        %v958 = vld [vmem:[%s1 + $0xc0] sm:$0xff]
        %v959 = vld [vmem:[%s1 + $0xc8] sm:$0xff]
        %v960 = vld [vmem:[%s1 + $0xd0] sm:$0xff]
        %v961 = vld [vmem:[%s1 + $0xd8] sm:$0xff]
        %v962 = vld [vmem:[%s1 + $0xe0] sm:$0xff]
        %v963 = vld [vmem:[%s1 + $0xe8] sm:$0xff]
        %v964 = vld [vmem:[%s1 + $0xf0] sm:$0xff]
        %v965 = vld [vmem:[%s1 + $0xf8] sm:$0xff]
        %v966 = vld [vmem:[%s1 + $0x100] sm:$0x1]
        %v967 = vld [vmem:[%s2] sm:$0x1]
        %v969 = vperm.slane %v967, 0
        %vm971 = vcmask 7168
        %v973 = vsel %vm971, %v933, 0
        %vm975 = vcmask 1040384
        %v977 = vsel %vm975, %v966, 0
        %979 = vmatpush.msra.mxu0 %v949
        %980 = vmatpush.msra.mxu0 %v948
        %981 = vmatpush.msra.mxu0 %v947
        %982 = vmatpush.msra.mxu0 %v946
        %983 = vmatpush.msra.mxu0 %v945
        %984 = vmatpush.msra.mxu0 %v944
        %985 = vmatpush.msra.mxu0 %v943
        %986 = vmatpush.msra.mxu0 %v942
        %987 = vmatpush.msra.mxu0 %v941
        %988 = vmatpush.msra.mxu0 %v940
        %989 = vmatpush.msra.mxu0 %v939
        %990 = vmatpush.msra.mxu0 %v938
        %991 = vmatpush.msra.mxu0 %v937
        %992 = vmatpush.msra.mxu0 %v936
        %993 = vmatpush.msra.mxu0 %v935
        %994 = vmatpush.msra.mxu0 %v934
        %995 = vmatmul.f32.gmra.mxu0 %v931
        %v996 = vpop.f32.mrf.mxu0
        %v997 = vadd.f32 %v969, %v996
        %998 = vdwg.mxu0
        %999 = vmatpush.msra.mxu0 %v965
        %1000 = vmatpush.msra.mxu0 %v964
        %1001 = vmatpush.msra.mxu0 %v963
        %1002 = vmatpush.msra.mxu0 %v962
        %1003 = vmatpush.msra.mxu0 %v961
        %1004 = vmatpush.msra.mxu0 %v960
        %1005 = vmatpush.msra.mxu0 %v959
        %1006 = vmatpush.msra.mxu0 %v958
        %1007 = vmatpush.msra.mxu0 %v957
        %1008 = vmatpush.msra.mxu0 %v956
        %1009 = vmatpush.msra.mxu0 %v955
        %1010 = vmatpush.msra.mxu0 %v954
        %1011 = vmatpush.msra.mxu0 %v953
        %1012 = vmatpush.msra.mxu0 %v952
        %1013 = vmatpush.msra.mxu0 %v951
        %1014 = vmatpush.msra.mxu0 %v950
        %1015 = vmatmul.f32.gmra.mxu0 %v932
        %v1016 = vpop.f32.mrf.mxu0
        %v1017 = vadd.f32 %v997, %v1016
        %1018 = vdwg.mxu0
        %1019 = vmatpush.msra.mxu0 0.0
        %1020 = vmatpush.msra.mxu0 0.0
        %1021 = vmatpush.msra.mxu0 0.0
        %1022 = vmatpush.msra.mxu0 0.0
        %1023 = vmatpush.msra.mxu0 0.0
        %1024 = vmatpush.msra.mxu0 0.0
        %1025 = vmatpush.msra.mxu0 0.0
        %1026 = vmatpush.msra.mxu0 0.0
        %1027 = vmatpush.msra.mxu0 0.0
        %1028 = vmatpush.msra.mxu0 0.0
        %1029 = vmatpush.msra.mxu0 0.0
        %1030 = vmatpush.msra.mxu0 0.0
        %1031 = vmatpush.msra.mxu0 0.0
        %1032 = vmatpush.msra.mxu0 0.0
        %1033 = vmatpush.msra.mxu0 0.0
        %1034 = vmatpush.msra.mxu0 %v977
        %1035 = vmatmul.f32.gmra.mxu0 %v973
        %v1036 = vpop.f32.mrf.mxu0
        %v1037 = vadd.f32 %v1017, %v1036
        %1038 = vdwg.mxu0
        %vm1039 = vcmask 258048
        %1040 = vst.msk [vmem:[#allocation2] sm:$0x1f] %vm1039, %v1037
      $region108: #{tpu_custom_call.1} parent=103 // pred_fallthru
        _
      %v1041 = vld [vmem:[#allocation2] sm:$0x1f]
      %v1042 = vld [vmem:[%s865] sm:$0x1]
      %v1043 = vld [vmem:[%s868] sm:$0x1]
      %vm1044 = vcmask 258048
      %v1045 = vsel %vm1044, %v1041, 0.0
      %1046 = vadd.xlane.f32.xlu0 %v1045
      %v1047 = vpop.xlane.xlu0 %1046
      %v1048 = vrcp.pop 32.0
      %v1049 = vmul.f32 32.0, %v1048
      %v1050 = vsub.f32 1.0, %v1049
      %v1051 = vmul.f32 %v1048, %v1050
      %v1052 = vadd.f32 %v1048, %v1051
      %vm1053 = vweird.f32 %v1048
      %v1054 = vsel %vm1053, %v1048, %v1052
      %v1055 = vmul.f32 %v1047, %v1054
      %v1056 = vsub.f32 %v1041, %v1055
      %v1057 = vmul.f32 %v1056, %v1056
      %v1058 = vsel %vm1044, %v1057, 0.0
      %1059 = vadd.xlane.f32.xlu0 %v1058
      %v1060 = vpop.xlane.xlu0 %1059
      %v1061 = vmul.f32 %v1060, %v1054
      %v1062 = vadd.f32 %v1061, 1e-05
      %v1063 = vrsqrt.pop %v1062
      %v1064 = vmul.f32 %v1063, %v1062
      %v1065 = vmul.f32 %v1064, %v1063
      %v1066 = vmul.f32 0.5, %v1065
      %v1067 = vsub.f32 1.5, %v1066
      %v1068 = vmul.f32 %v1063, %v1067
      %vm1069 = vweird.f32 %v1062
      %vm1070 = vweird.f32 %v1063
      %vm1071 = vmor %vm1069, %vm1070
      %v1072 = vsel %vm1071, %v1063, %v1068
      %v1073 = vmul.f32 %v1056, %v1072
      %v1075 = vperm.slane %v1042, 0
      %v1077 = vmul.f32 %v1073, %v1075
      %v1079 = vperm.slane %v1043, 0
      %v1081 = vadd.f32 %v1077, %v1079
      %v1082 = vld [vmem:[%s873] sm:$0xff]
      %v1083 = vld [vmem:[%s873 + $0x8] sm:$0xff]
      %v1084 = vld [vmem:[%s873 + $0x10] sm:$0xff]
      %v1085 = vld [vmem:[%s873 + $0x18] sm:$0xff]
      %v1086 = vld [vmem:[%s876] sm:$0x1]
      %v1088 = vperm.slane %v1086, 0
      %vm1090 = vcmask 261120
      %v1092 = vsel %vm1090, %v1081, 0
      %1094 = vmatpush.msra.mxu0 0.0
      %1095 = vmatpush.msra.mxu0 0.0
      %1096 = vmatpush.msra.mxu0 0.0
      %1097 = vmatpush.msra.mxu0 0.0
      %1098 = vmatpush.msra.mxu0 0.0
      %1099 = vmatpush.msra.mxu0 0.0
      %1100 = vmatpush.msra.mxu0 0.0
      %1101 = vmatpush.msra.mxu0 0.0
      %1102 = vmatpush.msra.mxu0 0.0
      %1103 = vmatpush.msra.mxu0 0.0
      %1104 = vmatpush.msra.mxu0 0.0
      %1105 = vmatpush.msra.mxu0 0.0
      %1106 = vmatpush.msra.mxu0 %v1085
      %1107 = vmatpush.msra.mxu0 %v1084
      %1108 = vmatpush.msra.mxu0 %v1083
      %1109 = vmatpush.msra.mxu0 %v1082
      %1110 = vmatmul.f32.gmra.mxu0 %v1092
      %v1111 = vpop.f32.mrf.mxu0
      %v1112 = vadd.f32 %v1088, %v1111
      %1113 = vdwg.mxu0
      %v1114 = vld [vmem:[%s881] sm:$0xff]
      %v1115 = vld [vmem:[%s881 + $0x8] sm:$0xff]
      %v1116 = vld [vmem:[%s881 + $0x10] sm:$0xff]
      %v1117 = vld [vmem:[%s881 + $0x18] sm:$0xff]
      %v1118 = vld [vmem:[%s884] sm:$0x1]
      %v1120 = vperm.slane %v1118, 0
      %1122 = vmatpush.msra.mxu0 0.0
      %1123 = vmatpush.msra.mxu0 0.0
      %1124 = vmatpush.msra.mxu0 0.0
      %1125 = vmatpush.msra.mxu0 0.0
      %1126 = vmatpush.msra.mxu0 0.0
      %1127 = vmatpush.msra.mxu0 0.0
      %1128 = vmatpush.msra.mxu0 0.0
      %1129 = vmatpush.msra.mxu0 0.0
      %1130 = vmatpush.msra.mxu0 0.0
      %1131 = vmatpush.msra.mxu0 0.0
      %1132 = vmatpush.msra.mxu0 0.0
      %1133 = vmatpush.msra.mxu0 0.0
      %1134 = vmatpush.msra.mxu0 %v1117
      %1135 = vmatpush.msra.mxu0 %v1116
      %1136 = vmatpush.msra.mxu0 %v1115
      %1137 = vmatpush.msra.mxu0 %v1114
      %1138 = vmatmul.f32.gmra.mxu0 %v1092
      %v1139 = vpop.f32.mrf.mxu0
      %v1140 = vadd.f32 %v1120, %v1139
      %1141 = vdwg.mxu0
      %v1142 = vld [vmem:[%s889] sm:$0xff]
      %v1143 = vld [vmem:[%s889 + $0x8] sm:$0xff]
      %v1144 = vld [vmem:[%s889 + $0x10] sm:$0xff]
      %v1145 = vld [vmem:[%s889 + $0x18] sm:$0xff]
      %v1146 = vld [vmem:[%s892] sm:$0x1]
      %v1148 = vperm.slane %v1146, 0
      %1150 = vmatpush.msra.mxu0 0.0
      %1151 = vmatpush.msra.mxu0 0.0
      %1152 = vmatpush.msra.mxu0 0.0
      %1153 = vmatpush.msra.mxu0 0.0
      %1154 = vmatpush.msra.mxu0 0.0
      %1155 = vmatpush.msra.mxu0 0.0
      %1156 = vmatpush.msra.mxu0 0.0
      %1157 = vmatpush.msra.mxu0 0.0
      %1158 = vmatpush.msra.mxu0 0.0
      %1159 = vmatpush.msra.mxu0 0.0
      %1160 = vmatpush.msra.mxu0 0.0
      %1161 = vmatpush.msra.mxu0 0.0
      %1162 = vmatpush.msra.mxu0 %v1145
      %1163 = vmatpush.msra.mxu0 %v1144
      %1164 = vmatpush.msra.mxu0 %v1143
      %1165 = vmatpush.msra.mxu0 %v1142
      %1166 = vmatmul.f32.gmra.mxu0 %v1092
      %v1167 = vpop.f32.mrf.mxu0
      %v1168 = vadd.f32 %v1148, %v1167
      %1169 = vdwg.mxu0
      %v1170 = vlaneseq
      %v1171 = vand.u32 %v1170, 127
      %vm1172 = vcmp.ge.s32.totalorder %v1171, 0
      %vm1173 = vcmp.lt.s32.totalorder %v1171, 8
      %vm1174 = vmand %vm1172, %vm1173
      %v1175 = vsel %vm1174, 1, 0
      %v1176 = vcvt.s32.f32 %v1175
      %v1177 = vmul.f32 %v1112, %v1176
      %v1179 = vsel %vm1090, %v1177, 0
      %v1182 = vsel %vm1090, %v1140, 0
      %1184 = vmatpush.xpose.msra.mxu0 0.0
      %1185 = vmatpush.xpose.msra.mxu0 0.0
      %1186 = vmatpush.xpose.msra.mxu0 0.0
      %1187 = vmatpush.xpose.msra.mxu0 0.0
      %1188 = vmatpush.xpose.msra.mxu0 0.0
      %1189 = vmatpush.xpose.msra.mxu0 0.0
      %1190 = vmatpush.xpose.msra.mxu0 0.0
      %1191 = vmatpush.xpose.msra.mxu0 0.0
      %1192 = vmatpush.xpose.msra.mxu0 0.0
      %1193 = vmatpush.xpose.msra.mxu0 0.0
      %1194 = vmatpush.xpose.msra.mxu0 0.0
      %1195 = vmatpush.xpose.msra.mxu0 0.0
      %1196 = vmatpush.xpose.msra.mxu0 0.0
      %1197 = vmatpush.xpose.msra.mxu0 0.0
      %1198 = vmatpush.xpose.msra.mxu0 0.0
      %1199 = vmatpush.xpose.msra.mxu0 %v1182
      %1200 = vmatmul.f32.gmra.mxu0 %v1179
      %v1201 = vpop.f32.mrf.mxu0
      %v1202 = vadd.f32 0.0, %v1201
      %1203 = vdwg.mxu0
      %vm1204 = vcmask 36864
      %v1205 = vsel %vm1204, %v1202, -inf
      %1206 = vmax.xlane.f32.xlu0 %v1205
      %v1207 = vpop.xlane.xlu0 %1206
      %v1208 = vsub.f32 %v1202, %v1207
      %v1209 = vmul.f32 %v1208, 1.442695
      %v1210 = vpow.pop %v1209
      %v1211 = vsel %vm1204, %v1210, 0.0
      %1212 = vadd.xlane.f32.xlu0 %v1211
      %v1213 = vpop.xlane.xlu0 %1212
      %v1214 = vrcp.pop %v1213
      %v1215 = vmul.f32 %v1210, %v1214
      %v1216 = vmul.f32 %v1168, %v1176
      %vm1217 = vcmp.ge.s32.totalorder %v1171, 8
      %vm1218 = vcmp.lt.s32.totalorder %v1171, 16
      %vm1219 = vmand %vm1217, %vm1218
      %v1220 = vsel %vm1219, 1, 0
      %v1221 = vcvt.s32.f32 %v1220
      %v1222 = vmul.f32 %v1112, %v1221
      %v1224 = vsel %vm1090, %v1222, 0
      %1226 = vmatpush.xpose.msra.mxu0 0.0
      %1227 = vmatpush.xpose.msra.mxu0 0.0
      %1228 = vmatpush.xpose.msra.mxu0 0.0
      %1229 = vmatpush.xpose.msra.mxu0 0.0
      %1230 = vmatpush.xpose.msra.mxu0 0.0
      %1231 = vmatpush.xpose.msra.mxu0 0.0
      %1232 = vmatpush.xpose.msra.mxu0 0.0
      %1233 = vmatpush.xpose.msra.mxu0 0.0
      %1234 = vmatpush.xpose.msra.mxu0 0.0
      %1235 = vmatpush.xpose.msra.mxu0 0.0
      %1236 = vmatpush.xpose.msra.mxu0 0.0
      %1237 = vmatpush.xpose.msra.mxu0 0.0
      %1238 = vmatpush.xpose.msra.mxu0 0.0
      %1239 = vmatpush.xpose.msra.mxu0 0.0
      %1240 = vmatpush.xpose.msra.mxu0 0.0
      %1241 = vmatpush.xpose.msra.mxu0 %v1182
      %1242 = vmatmul.f32.gmra.mxu0 %v1224
      %v1243 = vpop.f32.mrf.mxu0
      %v1244 = vadd.f32 0.0, %v1243
      %1245 = vdwg.mxu0
      %v1246 = vsel %vm1204, %v1244, -inf
      %1247 = vmax.xlane.f32.xlu0 %v1246
      %v1248 = vpop.xlane.xlu0 %1247
      %v1249 = vsub.f32 %v1244, %v1248
      %v1250 = vmul.f32 %v1249, 1.442695
      %v1251 = vpow.pop %v1250
      %v1252 = vsel %vm1204, %v1251, 0.0
      %1253 = vadd.xlane.f32.xlu0 %v1252
      %v1254 = vpop.xlane.xlu0 %1253
      %v1255 = vrcp.pop %v1254
      %v1256 = vmul.f32 %v1251, %v1255
      %v1257 = vmul.f32 %v1168, %v1221
      %vm1258 = vcmask 39936
      %v1260 = vsel %vm1258, %v1256, 0
      %vm1262 = vcmask 1044480
      %v1264 = vsel %vm1262, %v1257, 0
      %1266 = vmatpush.msra.mxu0 0.0
      %1267 = vmatpush.msra.mxu0 0.0
      %1268 = vmatpush.msra.mxu0 0.0
      %1269 = vmatpush.msra.mxu0 0.0
      %1270 = vmatpush.msra.mxu0 0.0
      %1271 = vmatpush.msra.mxu0 0.0
      %1272 = vmatpush.msra.mxu0 0.0
      %1273 = vmatpush.msra.mxu0 0.0
      %1274 = vmatpush.msra.mxu0 0.0
      %1275 = vmatpush.msra.mxu0 0.0
      %1276 = vmatpush.msra.mxu0 0.0
      %1277 = vmatpush.msra.mxu0 0.0
      %1278 = vmatpush.msra.mxu0 0.0
      %1279 = vmatpush.msra.mxu0 0.0
      %1280 = vmatpush.msra.mxu0 0.0
      %1281 = vmatpush.msra.mxu0 %v1264
      %1282 = vmatmul.f32.gmra.mxu0 %v1260
      %v1283 = vpop.f32.mrf.mxu0
      %v1284 = vadd.f32 0.0, %v1283
      %1285 = vdwg.mxu0
      %v1287 = vsel %vm1258, %v1215, 0
      %v1290 = vsel %vm1262, %v1216, 0
      %1292 = vmatpush.msra.mxu0 0.0
      %1293 = vmatpush.msra.mxu0 0.0
      %1294 = vmatpush.msra.mxu0 0.0
      %1295 = vmatpush.msra.mxu0 0.0
      %1296 = vmatpush.msra.mxu0 0.0
      %1297 = vmatpush.msra.mxu0 0.0
      %1298 = vmatpush.msra.mxu0 0.0
      %1299 = vmatpush.msra.mxu0 0.0
      %1300 = vmatpush.msra.mxu0 0.0
      %1301 = vmatpush.msra.mxu0 0.0
      %1302 = vmatpush.msra.mxu0 0.0
      %1303 = vmatpush.msra.mxu0 0.0
      %1304 = vmatpush.msra.mxu0 0.0
      %1305 = vmatpush.msra.mxu0 0.0
      %1306 = vmatpush.msra.mxu0 0.0
      %1307 = vmatpush.msra.mxu0 %v1290
      %1308 = vmatmul.f32.gmra.mxu0 %v1287
      %v1309 = vpop.f32.mrf.mxu0
      %v1310 = vadd.f32 %v1284, %v1309
      %1311 = vdwg.mxu0
      %vm1312 = vcmp.ge.s32.totalorder %v1171, 16
      %vm1313 = vcmp.lt.s32.totalorder %v1171, 24
      %vm1314 = vmand %vm1312, %vm1313
      %v1315 = vsel %vm1314, 1, 0
      %v1316 = vcvt.s32.f32 %v1315
      %v1317 = vmul.f32 %v1112, %v1316
      %v1319 = vsel %vm1090, %v1317, 0
      %1321 = vmatpush.xpose.msra.mxu0 0.0
      %1322 = vmatpush.xpose.msra.mxu0 0.0
      %1323 = vmatpush.xpose.msra.mxu0 0.0
      %1324 = vmatpush.xpose.msra.mxu0 0.0
      %1325 = vmatpush.xpose.msra.mxu0 0.0
      %1326 = vmatpush.xpose.msra.mxu0 0.0
      %1327 = vmatpush.xpose.msra.mxu0 0.0
      %1328 = vmatpush.xpose.msra.mxu0 0.0
      %1329 = vmatpush.xpose.msra.mxu0 0.0
      %1330 = vmatpush.xpose.msra.mxu0 0.0
      %1331 = vmatpush.xpose.msra.mxu0 0.0
      %1332 = vmatpush.xpose.msra.mxu0 0.0
      %1333 = vmatpush.xpose.msra.mxu0 0.0
      %1334 = vmatpush.xpose.msra.mxu0 0.0
      %1335 = vmatpush.xpose.msra.mxu0 0.0
      %1336 = vmatpush.xpose.msra.mxu0 %v1182
      %1337 = vmatmul.f32.gmra.mxu0 %v1319
      %v1338 = vpop.f32.mrf.mxu0
      %v1339 = vadd.f32 0.0, %v1338
      %1340 = vdwg.mxu0
      %v1341 = vsel %vm1204, %v1339, -inf
      %1342 = vmax.xlane.f32.xlu0 %v1341
      %v1343 = vpop.xlane.xlu0 %1342
      %v1344 = vsub.f32 %v1339, %v1343
      %v1345 = vmul.f32 %v1344, 1.442695
      %v1346 = vpow.pop %v1345
      %v1347 = vsel %vm1204, %v1346, 0.0
      %1348 = vadd.xlane.f32.xlu0 %v1347
      %v1349 = vpop.xlane.xlu0 %1348
      %v1350 = vrcp.pop %v1349
      %v1351 = vmul.f32 %v1346, %v1350
      %v1352 = vmul.f32 %v1168, %v1316
      %v1354 = vsel %vm1258, %v1351, 0
      %v1357 = vsel %vm1262, %v1352, 0
      %1359 = vmatpush.msra.mxu0 0.0
      %1360 = vmatpush.msra.mxu0 0.0
      %1361 = vmatpush.msra.mxu0 0.0
      %1362 = vmatpush.msra.mxu0 0.0
      %1363 = vmatpush.msra.mxu0 0.0
      %1364 = vmatpush.msra.mxu0 0.0
      %1365 = vmatpush.msra.mxu0 0.0
      %1366 = vmatpush.msra.mxu0 0.0
      %1367 = vmatpush.msra.mxu0 0.0
      %1368 = vmatpush.msra.mxu0 0.0
      %1369 = vmatpush.msra.mxu0 0.0
      %1370 = vmatpush.msra.mxu0 0.0
      %1371 = vmatpush.msra.mxu0 0.0
      %1372 = vmatpush.msra.mxu0 0.0
      %1373 = vmatpush.msra.mxu0 0.0
      %1374 = vmatpush.msra.mxu0 %v1357
      %1375 = vmatmul.f32.gmra.mxu0 %v1354
      %v1376 = vpop.f32.mrf.mxu0
      %v1377 = vadd.f32 0.0, %v1376
      %1378 = vdwg.mxu0
      %v1379 = vadd.f32 %v1310, %v1377
      %vm1380 = vcmp.ge.s32.totalorder %v1171, 24
      %vm1381 = vcmp.lt.s32.totalorder %v1171, 32
      %vm1382 = vmand %vm1380, %vm1381
      %v1383 = vsel %vm1382, 1, 0
      %v1384 = vcvt.s32.f32 %v1383
      %v1385 = vmul.f32 %v1112, %v1384
      %v1387 = vsel %vm1090, %v1385, 0
      %1389 = vmatpush.xpose.msra.mxu0 0.0
      %1390 = vmatpush.xpose.msra.mxu0 0.0
      %1391 = vmatpush.xpose.msra.mxu0 0.0
      %1392 = vmatpush.xpose.msra.mxu0 0.0
      %1393 = vmatpush.xpose.msra.mxu0 0.0
      %1394 = vmatpush.xpose.msra.mxu0 0.0
      %1395 = vmatpush.xpose.msra.mxu0 0.0
      %1396 = vmatpush.xpose.msra.mxu0 0.0
      %1397 = vmatpush.xpose.msra.mxu0 0.0
      %1398 = vmatpush.xpose.msra.mxu0 0.0
      %1399 = vmatpush.xpose.msra.mxu0 0.0
      %1400 = vmatpush.xpose.msra.mxu0 0.0
      %1401 = vmatpush.xpose.msra.mxu0 0.0
      %1402 = vmatpush.xpose.msra.mxu0 0.0
      %1403 = vmatpush.xpose.msra.mxu0 0.0
      %1404 = vmatpush.xpose.msra.mxu0 %v1182
      %1405 = vmatmul.f32.gmra.mxu0 %v1387
      %v1406 = vpop.f32.mrf.mxu0
      %v1407 = vadd.f32 0.0, %v1406
      %1408 = vdwg.mxu0
      %v1409 = vsel %vm1204, %v1407, -inf
      %1410 = vmax.xlane.f32.xlu0 %v1409
      %v1411 = vpop.xlane.xlu0 %1410
      %v1412 = vsub.f32 %v1407, %v1411
      %v1413 = vmul.f32 %v1412, 1.442695
      %v1414 = vpow.pop %v1413
      %v1415 = vsel %vm1204, %v1414, 0.0
      %1416 = vadd.xlane.f32.xlu0 %v1415
      %v1417 = vpop.xlane.xlu0 %1416
      %v1418 = vrcp.pop %v1417
      %v1419 = vmul.f32 %v1414, %v1418
      %v1420 = vmul.f32 %v1168, %v1384
      %v1422 = vsel %vm1258, %v1419, 0
      %v1425 = vsel %vm1262, %v1420, 0
      %1427 = vmatpush.msra.mxu0 0.0
      %1428 = vmatpush.msra.mxu0 0.0
      %1429 = vmatpush.msra.mxu0 0.0
      %1430 = vmatpush.msra.mxu0 0.0
      %1431 = vmatpush.msra.mxu0 0.0
      %1432 = vmatpush.msra.mxu0 0.0
      %1433 = vmatpush.msra.mxu0 0.0
      %1434 = vmatpush.msra.mxu0 0.0
      %1435 = vmatpush.msra.mxu0 0.0
      %1436 = vmatpush.msra.mxu0 0.0
      %1437 = vmatpush.msra.mxu0 0.0
      %1438 = vmatpush.msra.mxu0 0.0
      %1439 = vmatpush.msra.mxu0 0.0
      %1440 = vmatpush.msra.mxu0 0.0
      %1441 = vmatpush.msra.mxu0 0.0
      %1442 = vmatpush.msra.mxu0 %v1425
      %1443 = vmatmul.f32.gmra.mxu0 %v1422
      %v1444 = vpop.f32.mrf.mxu0
      %v1445 = vadd.f32 0.0, %v1444
      %1446 = vdwg.mxu0
      %v1447 = vadd.f32 %v1379, %v1445
      %v1448 = vld [vmem:[%s897] sm:$0xff]
      %v1449 = vld [vmem:[%s897 + $0x8] sm:$0xff]
      %v1450 = vld [vmem:[%s897 + $0x10] sm:$0xff]
      %v1451 = vld [vmem:[%s897 + $0x18] sm:$0xff]
      %v1453 = vsel %vm1090, %v1447, 0
      %1455 = vmatpush.msra.mxu0 0.0
      %1456 = vmatpush.msra.mxu0 0.0
      %1457 = vmatpush.msra.mxu0 0.0
      %1458 = vmatpush.msra.mxu0 0.0
      %1459 = vmatpush.msra.mxu0 0.0
      %1460 = vmatpush.msra.mxu0 0.0
      %1461 = vmatpush.msra.mxu0 0.0
      %1462 = vmatpush.msra.mxu0 0.0
      %1463 = vmatpush.msra.mxu0 0.0
      %1464 = vmatpush.msra.mxu0 0.0
      %1465 = vmatpush.msra.mxu0 0.0
      %1466 = vmatpush.msra.mxu0 0.0
      %1467 = vmatpush.msra.mxu0 %v1451
      %1468 = vmatpush.msra.mxu0 %v1450
      %1469 = vmatpush.msra.mxu0 %v1449
      %1470 = vmatpush.msra.mxu0 %v1448
      %1471 = vmatmul.f32.gmra.mxu0 %v1453
      %v1472 = vpop.f32.mrf.mxu0
      %v1473 = vadd.f32 0.0, %v1472
      %1474 = vdwg.mxu0
      %v1475 = vadd.f32 %v1041, %v1473
      %v1476 = vld [vmem:[%s900] sm:$0x1]
      %v1478 = vperm.slane %v1476, 0
      %v1480 = vadd.f32 %v1475, %v1478
      %v1481 = vld [vmem:[%s903] sm:$0x1]
      %v1482 = vld [vmem:[%s906] sm:$0x1]
      %v1483 = vsel %vm1044, %v1480, 0.0
      %1484 = vadd.xlane.f32.xlu0 %v1483
      %v1485 = vpop.xlane.xlu0 %1484
      %v1486 = vmul.f32 %v1485, %v1054
      %v1487 = vsub.f32 %v1480, %v1486
      %v1488 = vmul.f32 %v1487, %v1487
      %v1489 = vsel %vm1044, %v1488, 0.0
      %1490 = vadd.xlane.f32.xlu0 %v1489
      %v1491 = vpop.xlane.xlu0 %1490
      %v1492 = vmul.f32 %v1491, %v1054
      %v1493 = vadd.f32 %v1492, 1e-05
      %v1494 = vrsqrt.pop %v1493
      %v1495 = vmul.f32 %v1494, %v1493
      %v1496 = vmul.f32 %v1495, %v1494
      %v1497 = vmul.f32 0.5, %v1496
      %v1498 = vsub.f32 1.5, %v1497
      %v1499 = vmul.f32 %v1494, %v1498
      %vm1500 = vweird.f32 %v1493
      %vm1501 = vweird.f32 %v1494
      %vm1502 = vmor %vm1500, %vm1501
      %v1503 = vsel %vm1502, %v1494, %v1499
      %v1504 = vmul.f32 %v1487, %v1503
      %v1506 = vperm.slane %v1481, 0
      %v1508 = vmul.f32 %v1504, %v1506
      %v1510 = vperm.slane %v1482, 0
      %v1512 = vadd.f32 %v1508, %v1510
      %v1513 = vld [vmem:[%s911] sm:$0xff]
      %v1514 = vld [vmem:[%s911 + $0x8] sm:$0xff]
      %v1515 = vld [vmem:[%s911 + $0x10] sm:$0xff]
      %v1516 = vld [vmem:[%s911 + $0x18] sm:$0xff]
      %v1517 = vld [vmem:[%s914] sm:$0x1]
      %v1519 = vperm.slane %v1517, 0
      %v1522 = vsel %vm1090, %v1512, 0
      %1524 = vmatpush.msra.mxu0 0.0
      %1525 = vmatpush.msra.mxu0 0.0
      %1526 = vmatpush.msra.mxu0 0.0
      %1527 = vmatpush.msra.mxu0 0.0
      %1528 = vmatpush.msra.mxu0 0.0
      %1529 = vmatpush.msra.mxu0 0.0
      %1530 = vmatpush.msra.mxu0 0.0
      %1531 = vmatpush.msra.mxu0 0.0
      %1532 = vmatpush.msra.mxu0 0.0
      %1533 = vmatpush.msra.mxu0 0.0
      %1534 = vmatpush.msra.mxu0 0.0
      %1535 = vmatpush.msra.mxu0 0.0
      %1536 = vmatpush.msra.mxu0 %v1516
      %1537 = vmatpush.msra.mxu0 %v1515
      %1538 = vmatpush.msra.mxu0 %v1514
      %1539 = vmatpush.msra.mxu0 %v1513
      %1540 = vmatmul.f32.gmra.mxu0 %v1522
      %v1541 = vpop.f32.mrf.mxu0
      %v1542 = vadd.f32 %v1519, %v1541
      %1543 = vdwg.mxu0
      %v1544 = vmul.f32 %v1542, 0.70710677
      %v1545 = vand.u32 2147483647, %v1544
      %v1546 = vmul.f32 %v1545, 0.5
      %v1547 = vadd.f32 %v1546, 1.0
      %v1548 = vrcp.pop %v1547
      %v1549 = vmul.f32 %v1547, %v1548
      %v1550 = vsub.f32 1.0, %v1549
      %v1551 = vmul.f32 %v1548, %v1550
      %v1552 = vadd.f32 %v1548, %v1551
      %vm1553 = vweird.f32 %v1547
      %vm1554 = vweird.f32 %v1548
      %vm1555 = vmor %vm1553, %vm1554
      %v1556 = vsel %vm1555, %v1548, %v1552
      %v1557 = vand.u32 2147483647, %v1547
      %vm1558 = vcmp.eq.f32.partialorder %v1557, 8.507059e+37
      %v1559 = vand.u32 %v1547, 2147483648
      %v1560 = vor.u32 1.1754944e-38, %v1559
      %v1561 = vsel %vm1558, %v1560, %v1556
      %v1562 = vmul.f32 1.0, %v1561
      %v1563 = vmul.f32 %v1562, 0.17087276
      %v1564 = vadd.f32 %v1563, -0.82215226
      %v1565 = vmul.f32 %v1562, %v1564
      %v1566 = vadd.f32 %v1565, 1.4885159
      %v1567 = vmul.f32 %v1562, %v1566
      %v1568 = vadd.f32 %v1567, -1.135204
      %v1569 = vmul.f32 %v1562, %v1568
      %v1570 = vadd.f32 %v1569, 0.27886808
      %v1571 = vmul.f32 %v1562, %v1570
      %v1572 = vadd.f32 %v1571, -0.18628806
      %v1573 = vmul.f32 %v1562, %v1572
      %v1574 = vadd.f32 %v1573, 0.09678418
      %v1575 = vmul.f32 %v1562, %v1574
      %v1576 = vadd.f32 %v1575, 0.37409195
      %v1577 = vmul.f32 %v1562, %v1576
      %v1578 = vadd.f32 %v1577, 1.0000237
      %v1579 = vmul.f32 %v1562, %v1578
      %v1580 = vadd.f32 %v1579, -1.2655122
      %v1581 = vsub.f32 0.0, %v1545
      %v1582 = vmul.f32 %v1581, %v1545
      %v1583 = vadd.f32 %v1582, %v1580
      %v1584 = vmul.f32 %v1583, 1.442695
      %v1585 = vpow.pop %v1584
      %v1586 = vmul.f32 %v1562, %v1585
      %vm1587 = vcmp.ge.f32.partialorder %v1544, 0.0
      %v1588 = vsub.f32 2.0, %v1586
      %v1589 = vsel %vm1587, %v1586, %v1588
      %v1590 = vmul.f32 %v1589, 0.5
      %v1591 = vsub.f32 1.0, %v1590
      %v1592 = vmul.f32 %v1542, %v1591
      %v1593 = vld [vmem:[%s919] sm:$0xff]
      %v1594 = vld [vmem:[%s919 + $0x8] sm:$0xff]
      %v1595 = vld [vmem:[%s919 + $0x10] sm:$0xff]
      %v1596 = vld [vmem:[%s919 + $0x18] sm:$0xff]
      %v1597 = vld [vmem:[%s919 + $0x20] sm:$0xff]
      %v1598 = vld [vmem:[%s919 + $0x28] sm:$0xff]
      %v1599 = vld [vmem:[%s919 + $0x30] sm:$0xff]
      %v1600 = vld [vmem:[%s919 + $0x38] sm:$0xff]
      %vm1601 = vcmask 523264
      %v1603 = vsel %vm1601, %v1592, 0
      %1605 = vmatpush.msra.mxu0 0.0
      %1606 = vmatpush.msra.mxu0 0.0
      %1607 = vmatpush.msra.mxu0 0.0
      %1608 = vmatpush.msra.mxu0 0.0
      %1609 = vmatpush.msra.mxu0 0.0
      %1610 = vmatpush.msra.mxu0 0.0
      %1611 = vmatpush.msra.mxu0 0.0
      %1612 = vmatpush.msra.mxu0 0.0
      %1613 = vmatpush.msra.mxu0 %v1600
      %1614 = vmatpush.msra.mxu0 %v1599
      %1615 = vmatpush.msra.mxu0 %v1598
      %1616 = vmatpush.msra.mxu0 %v1597
      %1617 = vmatpush.msra.mxu0 %v1596
      %1618 = vmatpush.msra.mxu0 %v1595
      %1619 = vmatpush.msra.mxu0 %v1594
      %1620 = vmatpush.msra.mxu0 %v1593
      %1621 = vmatmul.f32.gmra.mxu0 %v1603
      %v1622 = vpop.f32.mrf.mxu0
      %v1623 = vadd.f32 0.0, %v1622
      %1624 = vdwg.mxu0
      %v1625 = vadd.f32 %v1480, %v1623
      %v1626 = vld [vmem:[%s922] sm:$0x1]
      %v1628 = vperm.slane %v1626, 0
      %v1630 = vadd.f32 %v1625, %v1628
      %1631 = vst.msk [vmem:[#allocation2] sm:$0x1f] %vm1044, %v1630
      %p1632 = scmp.eq.s32.totalorder %s37, 1
      // Predicated region
      $region109: #{tpu_custom_call.1} parent=103 // pred_check
        %p1633 = pneg %p1632
      $region110: #{tpu_custom_call.1} parent=103 // pred_check_branch
        %1635 = sbr.rel (%p1633) target = $region112
      $region111: #{tpu_custom_call.1} parent=103 // pred_region
        %v1636 = vld [vmem:[#allocation2] sm:$0x1f]
        %v1637 = vld [vmem:[%s19] sm:$0x1]
        %v1638 = vld [vmem:[%s20] sm:$0x1]
        %v1639 = vsel %vm1044, %v1636, 0.0
        %1640 = vadd.xlane.f32.xlu0 %v1639
        %v1641 = vpop.xlane.xlu0 %1640
        %v1642 = vmul.f32 %v1641, %v1054
        %v1643 = vsub.f32 %v1636, %v1642
        %v1644 = vmul.f32 %v1643, %v1643
        %v1645 = vsel %vm1044, %v1644, 0.0
        %1646 = vadd.xlane.f32.xlu0 %v1645
        %v1647 = vpop.xlane.xlu0 %1646
        %v1648 = vmul.f32 %v1647, %v1054
        %v1649 = vadd.f32 %v1648, 1e-05
        %v1650 = vrsqrt.pop %v1649
        %v1651 = vmul.f32 %v1650, %v1649
        %v1652 = vmul.f32 %v1651, %v1650
        %v1653 = vmul.f32 0.5, %v1652
        %v1654 = vsub.f32 1.5, %v1653
        %v1655 = vmul.f32 %v1650, %v1654
        %vm1656 = vweird.f32 %v1649
        %vm1657 = vweird.f32 %v1650
        %vm1658 = vmor %vm1656, %vm1657
        %v1659 = vsel %vm1658, %v1650, %v1655
        %v1660 = vmul.f32 %v1643, %v1659
        %v1662 = vperm.slane %v1637, 0
        %v1664 = vmul.f32 %v1660, %v1662
        %v1666 = vperm.slane %v1638, 0
        %v1668 = vadd.f32 %v1664, %v1666
        %1669 = vst.msk [vmem:[%s926] sm:$0x1f] %vm1044, %v1668
      $region112: #{tpu_custom_call.1} parent=103 // pred_fallthru
        _
      %p1670 = scmp.lt.s32.totalorder %s36, 1
      %s1671 = scalar_select %p1670, %s36, 1
      %s1672 = smul.addr %s1671, 8
      %s1673 = scalar_lea.vmem %s21, %s1672
      // Predicated region
      $region113: #{tpu_custom_call.1} parent=103 // pred_check
        %p1674 = pneg %p588
      $region114: #{tpu_custom_call.1} parent=103 // pred_check_branch
        %1676 = sbr.rel (%p1674) target = $region116
      $region115: #{tpu_custom_call.1} parent=103 // pred_region
        _
      $region116: #{tpu_custom_call.1} parent=103 // pred_fallthru
        _
    $region104: #{tpu_custom_call.1} parent=5 // pred_fallthru
      _
    %p1677 = scmp.le.s32.totalorder 2, %s27
    // Predicated region
    $region117: #{tpu_custom_call.1} parent=5 // pred_check
      %p1678 = pneg %p1677
    $region118: #{tpu_custom_call.1} parent=5 // pred_check_branch
      %1680 = sbr.rel (%p1678) target = $region120
    $region119: #{tpu_custom_call.1} parent=5 // pred_region
      %s1681 = ssub.s32 %s27, 2
      // Predicated region
      $region121: #{tpu_custom_call.1} parent=119 // pred_check
        %p1682 = pneg %p594
      $region122: #{tpu_custom_call.1} parent=119 // pred_check_branch
        %1684 = sbr.rel (%p1682) target = $region124
      $region123: #{tpu_custom_call.1} parent=119 // pred_region
        %p1685 = scmp.lt.s32.totalorder %s38, 1
        %s1686 = scalar_select %p1685, %s38, 1
        %s1687 = smul.addr %s1686, 8
        %s1688 = scalar_lea.vmem %s21, %s1687
      $region124: #{tpu_custom_call.1} parent=119 // pred_fallthru
        _
    $region120: #{tpu_custom_call.1} parent=5 // pred_fallthru
      _
  $region6: #{tpu_custom_call.1} parent=0 // loop_footer
    %s31 = sadd.s32 1, %s27
  $region7: #{tpu_custom_call.1} parent=0 // loop_footer_branch
    %26 = sbr.rel target = $region3
  $region8: #{tpu_custom_call.1} parent=0 // loop_exit
    _

</llo_original>
